<compile_context>
chip_gen: v5e
topology: v5e:2x2
jax: 0.10.0
libtpu: 0.0.40
codegen_flags: <defaults>
</compile_context>

<pallas_src>
import jax
import jax.numpy as jnp
from jax import lax
from jax.experimental import pallas as pl
from jax.experimental.pallas import tpu as pltpu

# ---------------- tiny BERT config (shrunk from bert-base-cased) ----------------
B, S = 2, 8            # batch, sequence length
H, NH, DH = 32, 4, 8   # hidden, num heads, head dim (NH * DH == H)
I = 128                # intermediate (4 * H, like BERT)
L = 2                  # encoder layers
VOCAB = 128
MAX_POS = 16
TYPE_VOCAB = 2
LN_EPS = 1e-12
NUM_CLASSES = 2

# lane offsets inside the per-layer weight slab [H, 3H + H + I + I]
_W_QKV = 0
_W_AO = 3 * H              # 96
_W_IW = 4 * H              # 128
_W_OWT = 4 * H + I         # 256
_W_LANES = 4 * H + 2 * I   # 384

# rows of the per-layer bias slab [L, 8, 1, 128]
_B_QKV, _B_AO, _B_LN1G, _B_LN1B, _B_IB, _B_OB, _B_LN2G, _B_LN2B = range(8)

_VMEM = pl.BlockSpec(memory_space=pltpu.MemorySpace.VMEM)


def _layernorm(h, g, b):
    mu = jnp.mean(h, axis=-1, keepdims=True)
    var = jnp.mean(jnp.square(h - mu), axis=-1, keepdims=True)
    return (h - mu) * lax.rsqrt(var + LN_EPS) * g + b


def _softmax_rows(s):
    mx = jnp.max(s, axis=-1, keepdims=True)
    e = jnp.exp(s - mx)
    return e * pl.reciprocal(jnp.sum(e, axis=-1, keepdims=True), approx=True)


# ---------------- single fused forward kernel ----------------
def fused_forward_kernel(ids_ref, mask_ref, emb_ref, w_ref, bias_ref, head_ref, o_ref):
    scale = 1.0 / (DH ** 0.5)
    f32, bf16 = jnp.float32, jnp.bfloat16

    # ---- embeddings: word-emb row gather as a one-hot MXU matmul (lane-dense) ----
    onehot = (ids_ref[...] ==
              lax.broadcasted_iota(jnp.int32, (B * S, VOCAB), 1)).astype(f32)
    we = jnp.dot(onehot, emb_ref[0:VOCAB, :], preferred_element_type=f32)    # [B*S, H]
    pe = emb_ref[VOCAB:VOCAB + S, :]                                         # [S, H]
    te = emb_ref[VOCAB + MAX_POS:VOCAB + MAX_POS + 1, :]                     # [1, H] (token_type_ids == 0)
    emb = we + jnp.concatenate([pe] * B, axis=0) + te

    hs = head_ref[...]                                                       # [H+8, 128] f32
    hv = hs[H:H + 1, :]                                                      # packed head vectors
    emb_ln_g, emb_ln_b = hv[:, 0:H], hv[:, H:2 * H]
    pooler_b, fc_b = hv[:, 2 * H:3 * H], hv[:, 3 * H:3 * H + NUM_CLASSES]

    x = _layernorm(emb, emb_ln_g, emb_ln_b)                                  # [B*S, H] f32
    # TODO(synk): BERT-internal dropouts and the head Dropout(p=0.3) run in
    # eval mode (identity); training-mode stochastic dropout not reproduced.

    # additive attention mask, hoisted out of the layer / batch / head loops
    neg_mask = (1.0 - mask_ref[...]) * -1e9                                  # [B, S]
    neg_rows = [neg_mask[b:b + 1, :] for b in range(B)]

    for l in range(L):                                                       # static unroll
        wl = w_ref[l]                                                        # [H, 384] bf16
        qkv_w, ao_w = wl[:, _W_QKV:_W_AO], wl[:, _W_AO:_W_IW]
        i_w, o_wT = wl[:, _W_IW:_W_OWT], wl[:, _W_OWT:_W_LANES]

        qkv_b = bias_ref[l, _B_QKV][:, 0:3 * H]
        ao_b = bias_ref[l, _B_AO][:, 0:H]
        ln1_g = bias_ref[l, _B_LN1G][:, 0:H]
        ln1_b = bias_ref[l, _B_LN1B][:, 0:H]
        i_b = bias_ref[l, _B_IB][:, 0:I]
        o_b = bias_ref[l, _B_OB][:, 0:H]
        ln2_g = bias_ref[l, _B_LN2G][:, 0:H]
        ln2_b = bias_ref[l, _B_LN2B][:, 0:H]

        # fused Q|K|V projection -> [B*S, 3H]
        qkv = jnp.dot(x.astype(bf16), qkv_w, preferred_element_type=f32) + qkv_b
        qkv16 = qkv.astype(bf16)

        # per-(batch, head) attention; head outputs concatenated lane-dense
        ctx_rows = []
        for b in range(B):
            rows = slice(b * S, (b + 1) * S)
            heads = []
            for h in range(NH):
                q_bh = qkv16[rows, h * DH:(h + 1) * DH]                      # [S, DH]
                k_bh = qkv16[rows, H + h * DH:H + (h + 1) * DH]              # [S, DH]
                v_bh = qkv16[rows, 2 * H + h * DH:2 * H + (h + 1) * DH]      # [S, DH]
                s = lax.dot_general(q_bh, k_bh, (((1,), (1,)), ((), ())),
                                    preferred_element_type=f32) * scale      # [S, S]
                p = _softmax_rows(s + neg_rows[b])
                heads.append(jnp.dot(p.astype(bf16), v_bh,
                                     preferred_element_type=f32))            # [S, DH]
            ctx_rows.append(jnp.concatenate(heads, axis=1))                  # [S, H]
        ctx = jnp.concatenate(ctx_rows, axis=0)                              # [B*S, H]

        attn_out = jnp.dot(ctx.astype(bf16), ao_w, preferred_element_type=f32) + ao_b
        x = _layernorm(attn_out + x, ln1_g, ln1_b)

        inter = jnp.dot(x.astype(bf16), i_w, preferred_element_type=f32) + i_b
        # TODO(synk): HF BERT uses exact (erf) GELU; tanh approximation used here.
        inter = jax.nn.gelu(inter, approximate=True)
        ffn = lax.dot_general(inter.astype(bf16), o_wT, (((1,), (1,)), ((), ())),
                              preferred_element_type=f32) + o_b
        x = _layernorm(ffn + x, ln2_g, ln2_b)

    # pooler on the [CLS] rows (row b*S of the flattened activation)
    cls = jnp.concatenate([x[b * S:b * S + 1, :] for b in range(B)], axis=0)  # [B, H]
    pooler_w = hs[0:H, 0:H].astype(bf16)
    fc_w = hs[0:H, H:H + NUM_CLASSES].astype(bf16)
    pooled = jnp.tanh(jnp.dot(cls.astype(bf16), pooler_w,
                              preferred_element_type=f32) + pooler_b)

    # self.drop(pooled): identity at inference.  Classifier + softmax(dim=1).
    logits = jnp.dot(pooled.astype(bf16), fc_w, preferred_element_type=f32) + fc_b
    o_ref[...] = _softmax_rows(logits).astype(o_ref.dtype)


# ---------------- wrapper ----------------
def forward(packed, input_ids, attention_masks):
    Bn, Sn = input_ids.shape
    ids = input_ids.reshape(Bn * Sn, 1).astype(jnp.int32)
    mask = attention_masks.astype(jnp.float32)
    return pl.pallas_call(
        fused_forward_kernel,
        out_shape=jax.ShapeDtypeStruct((Bn, NUM_CLASSES), jnp.float32),
        in_specs=[_VMEM] * 6,
        out_specs=_VMEM,
    )(ids, mask, packed["emb_slab"], packed["w_slab"],
      packed["bias_slab"], packed["head_slab"])


# ---------------- deterministic parameter init + packing ----------------
def init_params(key):
    keys = iter(jax.random.split(key, 64))

    def nrm(shape):
        return jax.random.normal(next(keys), shape, jnp.float32) * 0.02

    def zeros(shape):
        return jnp.zeros(shape, jnp.float32)

    def ones(shape):
        return jnp.ones(shape, jnp.float32)

    params = {
        "word_emb": nrm((VOCAB, H)),
        "pos_emb": nrm((MAX_POS, H)),
        "type_emb": nrm((TYPE_VOCAB, H)),
        "emb_ln_g": ones((1, H)),
        "emb_ln_b": zeros((1, H)),
        "pooler_w": nrm((H, H)),
        "pooler_b": zeros((H,)),
        "fc_w": nrm((H, NUM_CLASSES)),
        "fc_b": zeros((NUM_CLASSES,)),
        "layers": [],
    }
    for _ in range(L):
        params["layers"].append({
            "q_w": nrm((H, H)), "q_b": zeros((H,)),
            "k_w": nrm((H, H)), "k_b": zeros((H,)),
            "v_w": nrm((H, H)), "v_b": zeros((H,)),
            "ao_w": nrm((H, H)), "ao_b": zeros((H,)),
            "ln1_g": ones((1, H)), "ln1_b": zeros((1, H)),
            "i_w": nrm((H, I)), "i_b": zeros((I,)),
            "o_w": nrm((I, H)), "o_b": zeros((H,)),
            "ln2_g": ones((1, H)), "ln2_b": zeros((1, H)),
        })
    return params


def _pad_lanes(v, width=128):
    v = jnp.asarray(v, jnp.float32).reshape(-1)
    return jnp.pad(v, (0, width - v.shape[0]))


def pack_params(params):
    """Pack everything into 4 VMEM slabs (emb / per-layer weights / biases / head)."""
    lyrs = params["layers"]

    emb_slab = jnp.concatenate(
        [params["word_emb"], params["pos_emb"], params["type_emb"]], axis=0)   # [V+P+T, H]

    w_slab = jnp.stack([
        jnp.concatenate([jnp.concatenate([l["q_w"], l["k_w"], l["v_w"]], axis=1),
                         l["ao_w"], l["i_w"], l["o_w"].T], axis=1)
        for l in lyrs]).astype(jnp.bfloat16)                                   # [L, H, 384]

    bias_slab = jnp.stack([
        jnp.stack([_pad_lanes(jnp.concatenate([l["q_b"], l["k_b"], l["v_b"]])),
                   _pad_lanes(l["ao_b"]), _pad_lanes(l["ln1_g"]), _pad_lanes(l["ln1_b"]),
                   _pad_lanes(l["i_b"]), _pad_lanes(l["o_b"]),
                   _pad_lanes(l["ln2_g"]), _pad_lanes(l["ln2_b"])])
        for l in lyrs])[:, :, None, :]                                         # [L, 8, 1, 128]

    head_slab = jnp.zeros((H + 8, 128), jnp.float32)
    head_slab = head_slab.at[0:H, 0:H].set(params["pooler_w"])
    head_slab = head_slab.at[0:H, H:H + NUM_CLASSES].set(params["fc_w"])
    head_vec = jnp.concatenate([
        params["emb_ln_g"].reshape(-1), params["emb_ln_b"].reshape(-1),
        params["pooler_b"], jnp.pad(params["fc_b"], (0, H - NUM_CLASSES))])    # [4H] == [128]
    head_slab = head_slab.at[H, :].set(head_vec)

    return {"emb_slab": emb_slab, "w_slab": w_slab,
            "bias_slab": bias_slab, "head_slab": head_slab}


if __name__ == "__main__":
    key = jax.random.PRNGKey(0)
    pkey, ikey = jax.random.split(key)
    packed = pack_params(init_params(pkey))

    input_ids = jax.random.randint(ikey, (B, S), 0, VOCAB, dtype=jnp.int32)
    attention_masks = jnp.array(
        [[1] * S, [1] * (S - 2) + [0] * 2], dtype=jnp.int32)   # second sample padded

    probs = jax.jit(forward)(packed, input_ids, attention_masks)
    probs = jax.block_until_ready(probs)

    assert probs.shape == (B, NUM_CLASSES)
    assert bool(jnp.all(jnp.isfinite(probs)))
    assert bool(jnp.allclose(jnp.sum(probs, axis=1), 1.0, atol=1e-2))
    print("KERNEL_OK")
</pallas_src>

<mosaic_0001>
module attributes {stable_mosaic.version = 11 : i64} {
  func.func @fused_forward_kernel(%arg0: memref<16x1xi32, #tpu.memory_space<vmem>>, %arg1: memref<2x8xf32, #tpu.memory_space<vmem>>, %arg2: memref<146x32xf32, #tpu.memory_space<vmem>>, %arg3: memref<2x32x384xbf16, #tpu.memory_space<vmem>>, %arg4: memref<2x8x1x128xf32, #tpu.memory_space<vmem>>, %arg5: memref<40x128xf32, #tpu.memory_space<vmem>>, %arg6: memref<2x2xf32, #tpu.memory_space<vmem>>) attributes {dimension_semantics = [], scalar_prefetch = 0 : i64, scratch_operands = 0 : i64, tpu.core_type = #tpu.core_type<tc>} {
    %c0 = arith.constant 0 : index
    %c0_0 = arith.constant 0 : index
    %0 = vector.load %arg0[%c0, %c0_0] : memref<16x1xi32, #tpu.memory_space<vmem>>, vector<16x1xi32>
    %1 = tpu.iota {dimensions = array<i32: 1>} : vector<16x128xi32>
    %2 = vector.broadcast %0 : vector<16x1xi32> to vector<16x128xi32>
    %3 = arith.cmpi eq, %2, %1 : vector<16x128xi32>
    %4 = arith.extui %3 : vector<16x128xi1> to vector<16x128xi32>
    %5 = arith.sitofp %4 : vector<16x128xi32> to vector<16x128xf32>
    %c0_1 = arith.constant 0 : index
    %c0_2 = arith.constant 0 : index
    %6 = vector.load %arg2[%c0_1, %c0_2] : memref<146x32xf32, #tpu.memory_space<vmem>>, vector<128x32xf32>
    %cst = arith.constant dense<0.000000e+00> : vector<16x32xf32>
    %7 = tpu.matmul %5, %6, %cst {dimension_numbers = #tpu.dot_dimension_numbers<[1], [0], [0], [1], [0, 0, 1, 1], [], []>} : vector<16x128xf32>, vector<128x32xf32>, vector<16x32xf32> -> vector<16x32xf32>
    %c128 = arith.constant 128 : index
    %c0_3 = arith.constant 0 : index
    %8 = vector.load %arg2[%c128, %c0_3] : memref<146x32xf32, #tpu.memory_space<vmem>>, vector<8x32xf32>
    %c144 = arith.constant 144 : index
    %c0_4 = arith.constant 0 : index
    %9 = vector.load %arg2[%c144, %c0_4] : memref<146x32xf32, #tpu.memory_space<vmem>>, vector<1x32xf32>
    %10 = tpu.concatenate %8, %8 in 0 : vector<8x32xf32>, vector<8x32xf32> -> vector<16x32xf32>
    %11 = arith.addf %7, %10 : vector<16x32xf32>
    %12 = vector.broadcast %9 : vector<1x32xf32> to vector<16x32xf32>
    %13 = arith.addf %11, %12 : vector<16x32xf32>
    %c0_5 = arith.constant 0 : index
    %c0_6 = arith.constant 0 : index
    %14 = vector.load %arg5[%c0_5, %c0_6] : memref<40x128xf32, #tpu.memory_space<vmem>>, vector<40x128xf32>
    %15 = vector.extract_strided_slice %14 {offsets = [32, 0], sizes = [1, 128], strides = [1, 1]} : vector<40x128xf32> to vector<1x128xf32>
    %16 = vector.extract_strided_slice %15 {offsets = [0, 0], sizes = [1, 32], strides = [1, 1]} : vector<1x128xf32> to vector<1x32xf32>
    %17 = vector.extract_strided_slice %15 {offsets = [0, 32], sizes = [1, 32], strides = [1, 1]} : vector<1x128xf32> to vector<1x32xf32>
    %18 = vector.extract_strided_slice %15 {offsets = [0, 64], sizes = [1, 32], strides = [1, 1]} : vector<1x128xf32> to vector<1x32xf32>
    %19 = vector.extract_strided_slice %15 {offsets = [0, 96], sizes = [1, 2], strides = [1, 1]} : vector<1x128xf32> to vector<1x2xf32>
    %cst_7 = arith.constant dense<0.000000e+00> : vector<16xf32>
    %20 = vector.multi_reduction <add>, %13, %cst_7 [1] : vector<16x32xf32> to vector<16xf32>
    %21 = vector.shape_cast %20 : vector<16xf32> to vector<16x1xf32>
    %cst_8 = arith.constant 3.200000e+01 : f32
    %22 = vector.broadcast %cst_8 : f32 to vector<16x1xf32>
    %23 = arith.divf %21, %22 : vector<16x1xf32>
    %24 = vector.broadcast %23 : vector<16x1xf32> to vector<16x32xf32>
    %25 = arith.subf %13, %24 : vector<16x32xf32>
    %26 = arith.mulf %25, %25 : vector<16x32xf32>
    %cst_9 = arith.constant dense<0.000000e+00> : vector<16xf32>
    %27 = vector.multi_reduction <add>, %26, %cst_9 [1] : vector<16x32xf32> to vector<16xf32>
    %28 = vector.shape_cast %27 : vector<16xf32> to vector<16x1xf32>
    %cst_10 = arith.constant 3.200000e+01 : f32
    %29 = vector.broadcast %cst_10 : f32 to vector<16x1xf32>
    %30 = arith.divf %28, %29 : vector<16x1xf32>
    %31 = vector.broadcast %23 : vector<16x1xf32> to vector<16x32xf32>
    %32 = arith.subf %13, %31 : vector<16x32xf32>
    %cst_11 = arith.constant 9.99999996E-13 : f32
    %33 = vector.broadcast %cst_11 : f32 to vector<16x1xf32>
    %34 = arith.addf %30, %33 : vector<16x1xf32>
    %35 = math.rsqrt %34 : vector<16x1xf32>
    %36 = vector.broadcast %35 : vector<16x1xf32> to vector<16x32xf32>
    %37 = arith.mulf %32, %36 : vector<16x32xf32>
    %38 = vector.broadcast %16 : vector<1x32xf32> to vector<16x32xf32>
    %39 = arith.mulf %37, %38 : vector<16x32xf32>
    %40 = vector.broadcast %17 : vector<1x32xf32> to vector<16x32xf32>
    %41 = arith.addf %39, %40 : vector<16x32xf32>
    %c0_12 = arith.constant 0 : index
    %c0_13 = arith.constant 0 : index
    %42 = vector.load %arg1[%c0_12, %c0_13] : memref<2x8xf32, #tpu.memory_space<vmem>>, vector<2x8xf32>
    %cst_14 = arith.constant 1.000000e+00 : f32
    %43 = vector.broadcast %cst_14 : f32 to vector<2x8xf32>
    %44 = arith.subf %43, %42 : vector<2x8xf32>
    %cst_15 = arith.constant -1.000000e+09 : f32
    %45 = vector.broadcast %cst_15 : f32 to vector<2x8xf32>
    %46 = arith.mulf %44, %45 : vector<2x8xf32>
    %47 = vector.extract_strided_slice %46 {offsets = [0, 0], sizes = [1, 8], strides = [1, 1]} : vector<2x8xf32> to vector<1x8xf32>
    %48 = vector.extract_strided_slice %46 {offsets = [1, 0], sizes = [1, 8], strides = [1, 1]} : vector<2x8xf32> to vector<1x8xf32>
    %c0_16 = arith.constant 0 : index
    %c0_17 = arith.constant 0 : index
    %c0_18 = arith.constant 0 : index
    %49 = vector.load %arg3[%c0_16, %c0_17, %c0_18] : memref<2x32x384xbf16, #tpu.memory_space<vmem>>, vector<1x32x384xbf16>
    %50 = vector.shape_cast %49 : vector<1x32x384xbf16> to vector<32x384xbf16>
    %51 = vector.extract_strided_slice %50 {offsets = [0, 0], sizes = [32, 96], strides = [1, 1]} : vector<32x384xbf16> to vector<32x96xbf16>
    %52 = vector.extract_strided_slice %50 {offsets = [0, 96], sizes = [32, 32], strides = [1, 1]} : vector<32x384xbf16> to vector<32x32xbf16>
    %53 = vector.extract_strided_slice %50 {offsets = [0, 128], sizes = [32, 128], strides = [1, 1]} : vector<32x384xbf16> to vector<32x128xbf16>
    %54 = vector.extract_strided_slice %50 {offsets = [0, 256], sizes = [32, 128], strides = [1, 1]} : vector<32x384xbf16> to vector<32x128xbf16>
    %c0_19 = arith.constant 0 : index
    %c0_20 = arith.constant 0 : index
    %c0_21 = arith.constant 0 : index
    %c0_22 = arith.constant 0 : index
    %55 = vector.load %arg4[%c0_19, %c0_20, %c0_21, %c0_22] : memref<2x8x1x128xf32, #tpu.memory_space<vmem>>, vector<1x1x1x128xf32>
    %56 = vector.shape_cast %55 : vector<1x1x1x128xf32> to vector<1x128xf32>
    %57 = vector.extract_strided_slice %56 {offsets = [0, 0], sizes = [1, 96], strides = [1, 1]} : vector<1x128xf32> to vector<1x96xf32>
    %c0_23 = arith.constant 0 : index
    %c1 = arith.constant 1 : index
    %c0_24 = arith.constant 0 : index
    %c0_25 = arith.constant 0 : index
    %58 = vector.load %arg4[%c0_23, %c1, %c0_24, %c0_25] : memref<2x8x1x128xf32, #tpu.memory_space<vmem>>, vector<1x1x1x128xf32>
    %59 = vector.shape_cast %58 : vector<1x1x1x128xf32> to vector<1x128xf32>
    %60 = vector.extract_strided_slice %59 {offsets = [0, 0], sizes = [1, 32], strides = [1, 1]} : vector<1x128xf32> to vector<1x32xf32>
    %c0_26 = arith.constant 0 : index
    %c2 = arith.constant 2 : index
    %c0_27 = arith.constant 0 : index
    %c0_28 = arith.constant 0 : index
    %61 = vector.load %arg4[%c0_26, %c2, %c0_27, %c0_28] : memref<2x8x1x128xf32, #tpu.memory_space<vmem>>, vector<1x1x1x128xf32>
    %62 = vector.shape_cast %61 : vector<1x1x1x128xf32> to vector<1x128xf32>
    %63 = vector.extract_strided_slice %62 {offsets = [0, 0], sizes = [1, 32], strides = [1, 1]} : vector<1x128xf32> to vector<1x32xf32>
    %c0_29 = arith.constant 0 : index
    %c3 = arith.constant 3 : index
    %c0_30 = arith.constant 0 : index
    %c0_31 = arith.constant 0 : index
    %64 = vector.load %arg4[%c0_29, %c3, %c0_30, %c0_31] : memref<2x8x1x128xf32, #tpu.memory_space<vmem>>, vector<1x1x1x128xf32>
    %65 = vector.shape_cast %64 : vector<1x1x1x128xf32> to vector<1x128xf32>
    %66 = vector.extract_strided_slice %65 {offsets = [0, 0], sizes = [1, 32], strides = [1, 1]} : vector<1x128xf32> to vector<1x32xf32>
    %c0_32 = arith.constant 0 : index
    %c4 = arith.constant 4 : index
    %c0_33 = arith.constant 0 : index
    %c0_34 = arith.constant 0 : index
    %67 = vector.load %arg4[%c0_32, %c4, %c0_33, %c0_34] : memref<2x8x1x128xf32, #tpu.memory_space<vmem>>, vector<1x1x1x128xf32>
    %68 = vector.shape_cast %67 : vector<1x1x1x128xf32> to vector<1x128xf32>
    %c0_35 = arith.constant 0 : index
    %c5 = arith.constant 5 : index
    %c0_36 = arith.constant 0 : index
    %c0_37 = arith.constant 0 : index
    %69 = vector.load %arg4[%c0_35, %c5, %c0_36, %c0_37] : memref<2x8x1x128xf32, #tpu.memory_space<vmem>>, vector<1x1x1x128xf32>
    %70 = vector.shape_cast %69 : vector<1x1x1x128xf32> to vector<1x128xf32>
    %71 = vector.extract_strided_slice %70 {offsets = [0, 0], sizes = [1, 32], strides = [1, 1]} : vector<1x128xf32> to vector<1x32xf32>
    %c0_38 = arith.constant 0 : index
    %c6 = arith.constant 6 : index
    %c0_39 = arith.constant 0 : index
    %c0_40 = arith.constant 0 : index
    %72 = vector.load %arg4[%c0_38, %c6, %c0_39, %c0_40] : memref<2x8x1x128xf32, #tpu.memory_space<vmem>>, vector<1x1x1x128xf32>
    %73 = vector.shape_cast %72 : vector<1x1x1x128xf32> to vector<1x128xf32>
    %74 = vector.extract_strided_slice %73 {offsets = [0, 0], sizes = [1, 32], strides = [1, 1]} : vector<1x128xf32> to vector<1x32xf32>
    %c0_41 = arith.constant 0 : index
    %c7 = arith.constant 7 : index
    %c0_42 = arith.constant 0 : index
    %c0_43 = arith.constant 0 : index
    %75 = vector.load %arg4[%c0_41, %c7, %c0_42, %c0_43] : memref<2x8x1x128xf32, #tpu.memory_space<vmem>>, vector<1x1x1x128xf32>
    %76 = vector.shape_cast %75 : vector<1x1x1x128xf32> to vector<1x128xf32>
    %77 = vector.extract_strided_slice %76 {offsets = [0, 0], sizes = [1, 32], strides = [1, 1]} : vector<1x128xf32> to vector<1x32xf32>
    %78 = arith.truncf %41 : vector<16x32xf32> to vector<16x32xbf16>
    %cst_44 = arith.constant dense<0.000000e+00> : vector<16x96xf32>
    %79 = tpu.matmul %78, %51, %cst_44 {dimension_numbers = #tpu.dot_dimension_numbers<[1], [0], [0], [1], [0, 0, 1, 1], [], []>} : vector<16x32xbf16>, vector<32x96xbf16>, vector<16x96xf32> -> vector<16x96xf32>
    %80 = vector.broadcast %57 : vector<1x96xf32> to vector<16x96xf32>
    %81 = arith.addf %79, %80 : vector<16x96xf32>
    %82 = arith.truncf %81 : vector<16x96xf32> to vector<16x96xbf16>
    %83 = vector.extract_strided_slice %82 {offsets = [0, 0], sizes = [8, 8], strides = [1, 1]} : vector<16x96xbf16> to vector<8x8xbf16>
    %84 = vector.extract_strided_slice %82 {offsets = [0, 32], sizes = [8, 8], strides = [1, 1]} : vector<16x96xbf16> to vector<8x8xbf16>
    %85 = vector.extract_strided_slice %82 {offsets = [0, 64], sizes = [8, 8], strides = [1, 1]} : vector<16x96xbf16> to vector<8x8xbf16>
    %cst_45 = arith.constant dense<0.000000e+00> : vector<8x8xf32>
    %86 = tpu.matmul %83, %84, %cst_45 {dimension_numbers = #tpu.dot_dimension_numbers<[1], [1], [0], [0], [0, 0, 1, 0], [], []>} : vector<8x8xbf16>, vector<8x8xbf16>, vector<8x8xf32> -> vector<8x8xf32>
    %cst_46 = arith.constant 0.353553385 : f32
    %87 = vector.broadcast %cst_46 : f32 to vector<8x8xf32>
    %88 = arith.mulf %86, %87 : vector<8x8xf32>
    %89 = vector.broadcast %47 : vector<1x8xf32> to vector<8x8xf32>
    %90 = arith.addf %88, %89 : vector<8x8xf32>
    %cst_47 = arith.constant dense<0xFF800000> : vector<8xf32>
    %91 = vector.multi_reduction <maximumf>, %90, %cst_47 [1] : vector<8x8xf32> to vector<8xf32>
    %92 = vector.shape_cast %91 : vector<8xf32> to vector<8x1xf32>
    %93 = vector.broadcast %92 : vector<8x1xf32> to vector<8x8xf32>
    %94 = arith.subf %90, %93 : vector<8x8xf32>
    %95 = math.exp %94 : vector<8x8xf32>
    %cst_48 = arith.constant dense<0.000000e+00> : vector<8xf32>
    %96 = vector.multi_reduction <add>, %95, %cst_48 [1] : vector<8x8xf32> to vector<8xf32>
    %97 = vector.shape_cast %96 : vector<8xf32> to vector<8x1xf32>
    %98 = tpu.reciprocal %97 {approx = true} : vector<8x1xf32> -> vector<8x1xf32>
    %99 = vector.broadcast %98 : vector<8x1xf32> to vector<8x8xf32>
    %100 = arith.mulf %95, %99 : vector<8x8xf32>
    %101 = arith.truncf %100 : vector<8x8xf32> to vector<8x8xbf16>
    %cst_49 = arith.constant dense<0.000000e+00> : vector<8x8xf32>
    %102 = tpu.matmul %101, %85, %cst_49 {dimension_numbers = #tpu.dot_dimension_numbers<[1], [0], [0], [1], [0, 0, 1, 1], [], []>} : vector<8x8xbf16>, vector<8x8xbf16>, vector<8x8xf32> -> vector<8x8xf32>
    %103 = vector.extract_strided_slice %82 {offsets = [0, 8], sizes = [8, 8], strides = [1, 1]} : vector<16x96xbf16> to vector<8x8xbf16>
    %104 = vector.extract_strided_slice %82 {offsets = [0, 40], sizes = [8, 8], strides = [1, 1]} : vector<16x96xbf16> to vector<8x8xbf16>
    %105 = vector.extract_strided_slice %82 {offsets = [0, 72], sizes = [8, 8], strides = [1, 1]} : vector<16x96xbf16> to vector<8x8xbf16>
    %cst_50 = arith.constant dense<0.000000e+00> : vector<8x8xf32>
    %106 = tpu.matmul %103, %104, %cst_50 {dimension_numbers = #tpu.dot_dimension_numbers<[1], [1], [0], [0], [0, 0, 1, 0], [], []>} : vector<8x8xbf16>, vector<8x8xbf16>, vector<8x8xf32> -> vector<8x8xf32>
    %cst_51 = arith.constant 0.353553385 : f32
    %107 = vector.broadcast %cst_51 : f32 to vector<8x8xf32>
    %108 = arith.mulf %106, %107 : vector<8x8xf32>
    %109 = vector.broadcast %47 : vector<1x8xf32> to vector<8x8xf32>
    %110 = arith.addf %108, %109 : vector<8x8xf32>
    %cst_52 = arith.constant dense<0xFF800000> : vector<8xf32>
    %111 = vector.multi_reduction <maximumf>, %110, %cst_52 [1] : vector<8x8xf32> to vector<8xf32>
    %112 = vector.shape_cast %111 : vector<8xf32> to vector<8x1xf32>
    %113 = vector.broadcast %112 : vector<8x1xf32> to vector<8x8xf32>
    %114 = arith.subf %110, %113 : vector<8x8xf32>
    %115 = math.exp %114 : vector<8x8xf32>
    %cst_53 = arith.constant dense<0.000000e+00> : vector<8xf32>
    %116 = vector.multi_reduction <add>, %115, %cst_53 [1] : vector<8x8xf32> to vector<8xf32>
    %117 = vector.shape_cast %116 : vector<8xf32> to vector<8x1xf32>
    %118 = tpu.reciprocal %117 {approx = true} : vector<8x1xf32> -> vector<8x1xf32>
    %119 = vector.broadcast %118 : vector<8x1xf32> to vector<8x8xf32>
    %120 = arith.mulf %115, %119 : vector<8x8xf32>
    %121 = arith.truncf %120 : vector<8x8xf32> to vector<8x8xbf16>
    %cst_54 = arith.constant dense<0.000000e+00> : vector<8x8xf32>
    %122 = tpu.matmul %121, %105, %cst_54 {dimension_numbers = #tpu.dot_dimension_numbers<[1], [0], [0], [1], [0, 0, 1, 1], [], []>} : vector<8x8xbf16>, vector<8x8xbf16>, vector<8x8xf32> -> vector<8x8xf32>
    %123 = vector.extract_strided_slice %82 {offsets = [0, 16], sizes = [8, 8], strides = [1, 1]} : vector<16x96xbf16> to vector<8x8xbf16>
    %124 = vector.extract_strided_slice %82 {offsets = [0, 48], sizes = [8, 8], strides = [1, 1]} : vector<16x96xbf16> to vector<8x8xbf16>
    %125 = vector.extract_strided_slice %82 {offsets = [0, 80], sizes = [8, 8], strides = [1, 1]} : vector<16x96xbf16> to vector<8x8xbf16>
    %cst_55 = arith.constant dense<0.000000e+00> : vector<8x8xf32>
    %126 = tpu.matmul %123, %124, %cst_55 {dimension_numbers = #tpu.dot_dimension_numbers<[1], [1], [0], [0], [0, 0, 1, 0], [], []>} : vector<8x8xbf16>, vector<8x8xbf16>, vector<8x8xf32> -> vector<8x8xf32>
    %cst_56 = arith.constant 0.353553385 : f32
    %127 = vector.broadcast %cst_56 : f32 to vector<8x8xf32>
    %128 = arith.mulf %126, %127 : vector<8x8xf32>
    %129 = vector.broadcast %47 : vector<1x8xf32> to vector<8x8xf32>
    %130 = arith.addf %128, %129 : vector<8x8xf32>
    %cst_57 = arith.constant dense<0xFF800000> : vector<8xf32>
    %131 = vector.multi_reduction <maximumf>, %130, %cst_57 [1] : vector<8x8xf32> to vector<8xf32>
    %132 = vector.shape_cast %131 : vector<8xf32> to vector<8x1xf32>
    %133 = vector.broadcast %132 : vector<8x1xf32> to vector<8x8xf32>
    %134 = arith.subf %130, %133 : vector<8x8xf32>
    %135 = math.exp %134 : vector<8x8xf32>
    %cst_58 = arith.constant dense<0.000000e+00> : vector<8xf32>
    %136 = vector.multi_reduction <add>, %135, %cst_58 [1] : vector<8x8xf32> to vector<8xf32>
    %137 = vector.shape_cast %136 : vector<8xf32> to vector<8x1xf32>
    %138 = tpu.reciprocal %137 {approx = true} : vector<8x1xf32> -> vector<8x1xf32>
    %139 = vector.broadcast %138 : vector<8x1xf32> to vector<8x8xf32>
    %140 = arith.mulf %135, %139 : vector<8x8xf32>
    %141 = arith.truncf %140 : vector<8x8xf32> to vector<8x8xbf16>
    %cst_59 = arith.constant dense<0.000000e+00> : vector<8x8xf32>
    %142 = tpu.matmul %141, %125, %cst_59 {dimension_numbers = #tpu.dot_dimension_numbers<[1], [0], [0], [1], [0, 0, 1, 1], [], []>} : vector<8x8xbf16>, vector<8x8xbf16>, vector<8x8xf32> -> vector<8x8xf32>
    %143 = vector.extract_strided_slice %82 {offsets = [0, 24], sizes = [8, 8], strides = [1, 1]} : vector<16x96xbf16> to vector<8x8xbf16>
    %144 = vector.extract_strided_slice %82 {offsets = [0, 56], sizes = [8, 8], strides = [1, 1]} : vector<16x96xbf16> to vector<8x8xbf16>
    %145 = vector.extract_strided_slice %82 {offsets = [0, 88], sizes = [8, 8], strides = [1, 1]} : vector<16x96xbf16> to vector<8x8xbf16>
    %cst_60 = arith.constant dense<0.000000e+00> : vector<8x8xf32>
    %146 = tpu.matmul %143, %144, %cst_60 {dimension_numbers = #tpu.dot_dimension_numbers<[1], [1], [0], [0], [0, 0, 1, 0], [], []>} : vector<8x8xbf16>, vector<8x8xbf16>, vector<8x8xf32> -> vector<8x8xf32>
    %cst_61 = arith.constant 0.353553385 : f32
    %147 = vector.broadcast %cst_61 : f32 to vector<8x8xf32>
    %148 = arith.mulf %146, %147 : vector<8x8xf32>
    %149 = vector.broadcast %47 : vector<1x8xf32> to vector<8x8xf32>
    %150 = arith.addf %148, %149 : vector<8x8xf32>
    %cst_62 = arith.constant dense<0xFF800000> : vector<8xf32>
    %151 = vector.multi_reduction <maximumf>, %150, %cst_62 [1] : vector<8x8xf32> to vector<8xf32>
    %152 = vector.shape_cast %151 : vector<8xf32> to vector<8x1xf32>
    %153 = vector.broadcast %152 : vector<8x1xf32> to vector<8x8xf32>
    %154 = arith.subf %150, %153 : vector<8x8xf32>
    %155 = math.exp %154 : vector<8x8xf32>
    %cst_63 = arith.constant dense<0.000000e+00> : vector<8xf32>
    %156 = vector.multi_reduction <add>, %155, %cst_63 [1] : vector<8x8xf32> to vector<8xf32>
    %157 = vector.shape_cast %156 : vector<8xf32> to vector<8x1xf32>
    %158 = tpu.reciprocal %157 {approx = true} : vector<8x1xf32> -> vector<8x1xf32>
    %159 = vector.broadcast %158 : vector<8x1xf32> to vector<8x8xf32>
    %160 = arith.mulf %155, %159 : vector<8x8xf32>
    %161 = arith.truncf %160 : vector<8x8xf32> to vector<8x8xbf16>
    %cst_64 = arith.constant dense<0.000000e+00> : vector<8x8xf32>
    %162 = tpu.matmul %161, %145, %cst_64 {dimension_numbers = #tpu.dot_dimension_numbers<[1], [0], [0], [1], [0, 0, 1, 1], [], []>} : vector<8x8xbf16>, vector<8x8xbf16>, vector<8x8xf32> -> vector<8x8xf32>
    %163 = tpu.concatenate %102, %122, %142, %162 in 1 : vector<8x8xf32>, vector<8x8xf32>, vector<8x8xf32>, vector<8x8xf32> -> vector<8x32xf32>
    %164 = vector.extract_strided_slice %82 {offsets = [8, 0], sizes = [8, 8], strides = [1, 1]} : vector<16x96xbf16> to vector<8x8xbf16>
    %165 = vector.extract_strided_slice %82 {offsets = [8, 32], sizes = [8, 8], strides = [1, 1]} : vector<16x96xbf16> to vector<8x8xbf16>
    %166 = vector.extract_strided_slice %82 {offsets = [8, 64], sizes = [8, 8], strides = [1, 1]} : vector<16x96xbf16> to vector<8x8xbf16>
    %cst_65 = arith.constant dense<0.000000e+00> : vector<8x8xf32>
    %167 = tpu.matmul %164, %165, %cst_65 {dimension_numbers = #tpu.dot_dimension_numbers<[1], [1], [0], [0], [0, 0, 1, 0], [], []>} : vector<8x8xbf16>, vector<8x8xbf16>, vector<8x8xf32> -> vector<8x8xf32>
    %cst_66 = arith.constant 0.353553385 : f32
    %168 = vector.broadcast %cst_66 : f32 to vector<8x8xf32>
    %169 = arith.mulf %167, %168 : vector<8x8xf32>
    %170 = vector.broadcast %48 : vector<1x8xf32> to vector<8x8xf32>
    %171 = arith.addf %169, %170 : vector<8x8xf32>
    %cst_67 = arith.constant dense<0xFF800000> : vector<8xf32>
    %172 = vector.multi_reduction <maximumf>, %171, %cst_67 [1] : vector<8x8xf32> to vector<8xf32>
    %173 = vector.shape_cast %172 : vector<8xf32> to vector<8x1xf32>
    %174 = vector.broadcast %173 : vector<8x1xf32> to vector<8x8xf32>
    %175 = arith.subf %171, %174 : vector<8x8xf32>
    %176 = math.exp %175 : vector<8x8xf32>
    %cst_68 = arith.constant dense<0.000000e+00> : vector<8xf32>
    %177 = vector.multi_reduction <add>, %176, %cst_68 [1] : vector<8x8xf32> to vector<8xf32>
    %178 = vector.shape_cast %177 : vector<8xf32> to vector<8x1xf32>
    %179 = tpu.reciprocal %178 {approx = true} : vector<8x1xf32> -> vector<8x1xf32>
    %180 = vector.broadcast %179 : vector<8x1xf32> to vector<8x8xf32>
    %181 = arith.mulf %176, %180 : vector<8x8xf32>
    %182 = arith.truncf %181 : vector<8x8xf32> to vector<8x8xbf16>
    %cst_69 = arith.constant dense<0.000000e+00> : vector<8x8xf32>
    %183 = tpu.matmul %182, %166, %cst_69 {dimension_numbers = #tpu.dot_dimension_numbers<[1], [0], [0], [1], [0, 0, 1, 1], [], []>} : vector<8x8xbf16>, vector<8x8xbf16>, vector<8x8xf32> -> vector<8x8xf32>
    %184 = vector.extract_strided_slice %82 {offsets = [8, 8], sizes = [8, 8], strides = [1, 1]} : vector<16x96xbf16> to vector<8x8xbf16>
    %185 = vector.extract_strided_slice %82 {offsets = [8, 40], sizes = [8, 8], strides = [1, 1]} : vector<16x96xbf16> to vector<8x8xbf16>
    %186 = vector.extract_strided_slice %82 {offsets = [8, 72], sizes = [8, 8], strides = [1, 1]} : vector<16x96xbf16> to vector<8x8xbf16>
    %cst_70 = arith.constant dense<0.000000e+00> : vector<8x8xf32>
    %187 = tpu.matmul %184, %185, %cst_70 {dimension_numbers = #tpu.dot_dimension_numbers<[1], [1], [0], [0], [0, 0, 1, 0], [], []>} : vector<8x8xbf16>, vector<8x8xbf16>, vector<8x8xf32> -> vector<8x8xf32>
    %cst_71 = arith.constant 0.353553385 : f32
    %188 = vector.broadcast %cst_71 : f32 to vector<8x8xf32>
    %189 = arith.mulf %187, %188 : vector<8x8xf32>
    %190 = vector.broadcast %48 : vector<1x8xf32> to vector<8x8xf32>
    %191 = arith.addf %189, %190 : vector<8x8xf32>
    %cst_72 = arith.constant dense<0xFF800000> : vector<8xf32>
    %192 = vector.multi_reduction <maximumf>, %191, %cst_72 [1] : vector<8x8xf32> to vector<8xf32>
    %193 = vector.shape_cast %192 : vector<8xf32> to vector<8x1xf32>
    %194 = vector.broadcast %193 : vector<8x1xf32> to vector<8x8xf32>
    %195 = arith.subf %191, %194 : vector<8x8xf32>
    %196 = math.exp %195 : vector<8x8xf32>
    %cst_73 = arith.constant dense<0.000000e+00> : vector<8xf32>
    %197 = vector.multi_reduction <add>, %196, %cst_73 [1] : vector<8x8xf32> to vector<8xf32>
    %198 = vector.shape_cast %197 : vector<8xf32> to vector<8x1xf32>
    %199 = tpu.reciprocal %198 {approx = true} : vector<8x1xf32> -> vector<8x1xf32>
    %200 = vector.broadcast %199 : vector<8x1xf32> to vector<8x8xf32>
    %201 = arith.mulf %196, %200 : vector<8x8xf32>
    %202 = arith.truncf %201 : vector<8x8xf32> to vector<8x8xbf16>
    %cst_74 = arith.constant dense<0.000000e+00> : vector<8x8xf32>
    %203 = tpu.matmul %202, %186, %cst_74 {dimension_numbers = #tpu.dot_dimension_numbers<[1], [0], [0], [1], [0, 0, 1, 1], [], []>} : vector<8x8xbf16>, vector<8x8xbf16>, vector<8x8xf32> -> vector<8x8xf32>
    %204 = vector.extract_strided_slice %82 {offsets = [8, 16], sizes = [8, 8], strides = [1, 1]} : vector<16x96xbf16> to vector<8x8xbf16>
    %205 = vector.extract_strided_slice %82 {offsets = [8, 48], sizes = [8, 8], strides = [1, 1]} : vector<16x96xbf16> to vector<8x8xbf16>
    %206 = vector.extract_strided_slice %82 {offsets = [8, 80], sizes = [8, 8], strides = [1, 1]} : vector<16x96xbf16> to vector<8x8xbf16>
    %cst_75 = arith.constant dense<0.000000e+00> : vector<8x8xf32>
    %207 = tpu.matmul %204, %205, %cst_75 {dimension_numbers = #tpu.dot_dimension_numbers<[1], [1], [0], [0], [0, 0, 1, 0], [], []>} : vector<8x8xbf16>, vector<8x8xbf16>, vector<8x8xf32> -> vector<8x8xf32>
    %cst_76 = arith.constant 0.353553385 : f32
    %208 = vector.broadcast %cst_76 : f32 to vector<8x8xf32>
    %209 = arith.mulf %207, %208 : vector<8x8xf32>
    %210 = vector.broadcast %48 : vector<1x8xf32> to vector<8x8xf32>
    %211 = arith.addf %209, %210 : vector<8x8xf32>
    %cst_77 = arith.constant dense<0xFF800000> : vector<8xf32>
    %212 = vector.multi_reduction <maximumf>, %211, %cst_77 [1] : vector<8x8xf32> to vector<8xf32>
    %213 = vector.shape_cast %212 : vector<8xf32> to vector<8x1xf32>
    %214 = vector.broadcast %213 : vector<8x1xf32> to vector<8x8xf32>
    %215 = arith.subf %211, %214 : vector<8x8xf32>
    %216 = math.exp %215 : vector<8x8xf32>
    %cst_78 = arith.constant dense<0.000000e+00> : vector<8xf32>
    %217 = vector.multi_reduction <add>, %216, %cst_78 [1] : vector<8x8xf32> to vector<8xf32>
    %218 = vector.shape_cast %217 : vector<8xf32> to vector<8x1xf32>
    %219 = tpu.reciprocal %218 {approx = true} : vector<8x1xf32> -> vector<8x1xf32>
    %220 = vector.broadcast %219 : vector<8x1xf32> to vector<8x8xf32>
    %221 = arith.mulf %216, %220 : vector<8x8xf32>
    %222 = arith.truncf %221 : vector<8x8xf32> to vector<8x8xbf16>
    %cst_79 = arith.constant dense<0.000000e+00> : vector<8x8xf32>
    %223 = tpu.matmul %222, %206, %cst_79 {dimension_numbers = #tpu.dot_dimension_numbers<[1], [0], [0], [1], [0, 0, 1, 1], [], []>} : vector<8x8xbf16>, vector<8x8xbf16>, vector<8x8xf32> -> vector<8x8xf32>
    %224 = vector.extract_strided_slice %82 {offsets = [8, 24], sizes = [8, 8], strides = [1, 1]} : vector<16x96xbf16> to vector<8x8xbf16>
    %225 = vector.extract_strided_slice %82 {offsets = [8, 56], sizes = [8, 8], strides = [1, 1]} : vector<16x96xbf16> to vector<8x8xbf16>
    %226 = vector.extract_strided_slice %82 {offsets = [8, 88], sizes = [8, 8], strides = [1, 1]} : vector<16x96xbf16> to vector<8x8xbf16>
    %cst_80 = arith.constant dense<0.000000e+00> : vector<8x8xf32>
    %227 = tpu.matmul %224, %225, %cst_80 {dimension_numbers = #tpu.dot_dimension_numbers<[1], [1], [0], [0], [0, 0, 1, 0], [], []>} : vector<8x8xbf16>, vector<8x8xbf16>, vector<8x8xf32> -> vector<8x8xf32>
    %cst_81 = arith.constant 0.353553385 : f32
    %228 = vector.broadcast %cst_81 : f32 to vector<8x8xf32>
    %229 = arith.mulf %227, %228 : vector<8x8xf32>
    %230 = vector.broadcast %48 : vector<1x8xf32> to vector<8x8xf32>
    %231 = arith.addf %229, %230 : vector<8x8xf32>
    %cst_82 = arith.constant dense<0xFF800000> : vector<8xf32>
    %232 = vector.multi_reduction <maximumf>, %231, %cst_82 [1] : vector<8x8xf32> to vector<8xf32>
    %233 = vector.shape_cast %232 : vector<8xf32> to vector<8x1xf32>
    %234 = vector.broadcast %233 : vector<8x1xf32> to vector<8x8xf32>
    %235 = arith.subf %231, %234 : vector<8x8xf32>
    %236 = math.exp %235 : vector<8x8xf32>
    %cst_83 = arith.constant dense<0.000000e+00> : vector<8xf32>
    %237 = vector.multi_reduction <add>, %236, %cst_83 [1] : vector<8x8xf32> to vector<8xf32>
    %238 = vector.shape_cast %237 : vector<8xf32> to vector<8x1xf32>
    %239 = tpu.reciprocal %238 {approx = true} : vector<8x1xf32> -> vector<8x1xf32>
    %240 = vector.broadcast %239 : vector<8x1xf32> to vector<8x8xf32>
    %241 = arith.mulf %236, %240 : vector<8x8xf32>
    %242 = arith.truncf %241 : vector<8x8xf32> to vector<8x8xbf16>
    %cst_84 = arith.constant dense<0.000000e+00> : vector<8x8xf32>
    %243 = tpu.matmul %242, %226, %cst_84 {dimension_numbers = #tpu.dot_dimension_numbers<[1], [0], [0], [1], [0, 0, 1, 1], [], []>} : vector<8x8xbf16>, vector<8x8xbf16>, vector<8x8xf32> -> vector<8x8xf32>
    %244 = tpu.concatenate %183, %203, %223, %243 in 1 : vector<8x8xf32>, vector<8x8xf32>, vector<8x8xf32>, vector<8x8xf32> -> vector<8x32xf32>
    %245 = tpu.concatenate %163, %244 in 0 : vector<8x32xf32>, vector<8x32xf32> -> vector<16x32xf32>
    %246 = arith.truncf %245 : vector<16x32xf32> to vector<16x32xbf16>
    %cst_85 = arith.constant dense<0.000000e+00> : vector<16x32xf32>
    %247 = tpu.matmul %246, %52, %cst_85 {dimension_numbers = #tpu.dot_dimension_numbers<[1], [0], [0], [1], [0, 0, 1, 1], [], []>} : vector<16x32xbf16>, vector<32x32xbf16>, vector<16x32xf32> -> vector<16x32xf32>
    %248 = vector.broadcast %60 : vector<1x32xf32> to vector<16x32xf32>
    %249 = arith.addf %247, %248 : vector<16x32xf32>
    %250 = arith.addf %249, %41 : vector<16x32xf32>
    %cst_86 = arith.constant dense<0.000000e+00> : vector<16xf32>
    %251 = vector.multi_reduction <add>, %250, %cst_86 [1] : vector<16x32xf32> to vector<16xf32>
    %252 = vector.shape_cast %251 : vector<16xf32> to vector<16x1xf32>
    %cst_87 = arith.constant 3.200000e+01 : f32
    %253 = vector.broadcast %cst_87 : f32 to vector<16x1xf32>
    %254 = arith.divf %252, %253 : vector<16x1xf32>
    %255 = vector.broadcast %254 : vector<16x1xf32> to vector<16x32xf32>
    %256 = arith.subf %250, %255 : vector<16x32xf32>
    %257 = arith.mulf %256, %256 : vector<16x32xf32>
    %cst_88 = arith.constant dense<0.000000e+00> : vector<16xf32>
    %258 = vector.multi_reduction <add>, %257, %cst_88 [1] : vector<16x32xf32> to vector<16xf32>
    %259 = vector.shape_cast %258 : vector<16xf32> to vector<16x1xf32>
    %cst_89 = arith.constant 3.200000e+01 : f32
    %260 = vector.broadcast %cst_89 : f32 to vector<16x1xf32>
    %261 = arith.divf %259, %260 : vector<16x1xf32>
    %262 = vector.broadcast %254 : vector<16x1xf32> to vector<16x32xf32>
    %263 = arith.subf %250, %262 : vector<16x32xf32>
    %cst_90 = arith.constant 9.99999996E-13 : f32
    %264 = vector.broadcast %cst_90 : f32 to vector<16x1xf32>
    %265 = arith.addf %261, %264 : vector<16x1xf32>
    %266 = math.rsqrt %265 : vector<16x1xf32>
    %267 = vector.broadcast %266 : vector<16x1xf32> to vector<16x32xf32>
    %268 = arith.mulf %263, %267 : vector<16x32xf32>
    %269 = vector.broadcast %63 : vector<1x32xf32> to vector<16x32xf32>
    %270 = arith.mulf %268, %269 : vector<16x32xf32>
    %271 = vector.broadcast %66 : vector<1x32xf32> to vector<16x32xf32>
    %272 = arith.addf %270, %271 : vector<16x32xf32>
    %273 = arith.truncf %272 : vector<16x32xf32> to vector<16x32xbf16>
    %cst_91 = arith.constant dense<0.000000e+00> : vector<16x128xf32>
    %274 = tpu.matmul %273, %53, %cst_91 {dimension_numbers = #tpu.dot_dimension_numbers<[1], [0], [0], [1], [0, 0, 1, 1], [], []>} : vector<16x32xbf16>, vector<32x128xbf16>, vector<16x128xf32> -> vector<16x128xf32>
    %275 = vector.broadcast %68 : vector<1x128xf32> to vector<16x128xf32>
    %276 = arith.addf %274, %275 : vector<16x128xf32>
    %277 = arith.mulf %276, %276 : vector<16x128xf32>
    %278 = arith.mulf %276, %277 : vector<16x128xf32>
    %cst_92 = arith.constant 4.471500e-02 : f32
    %279 = vector.broadcast %cst_92 : f32 to vector<16x128xf32>
    %280 = arith.mulf %279, %278 : vector<16x128xf32>
    %281 = arith.addf %276, %280 : vector<16x128xf32>
    %cst_93 = arith.constant 0.797884583 : f32
    %282 = vector.broadcast %cst_93 : f32 to vector<16x128xf32>
    %283 = arith.mulf %282, %281 : vector<16x128xf32>
    %284 = math.tanh %283 : vector<16x128xf32>
    %cst_94 = arith.constant 1.000000e+00 : f32
    %285 = vector.broadcast %cst_94 : f32 to vector<16x128xf32>
    %286 = arith.addf %285, %284 : vector<16x128xf32>
    %cst_95 = arith.constant 5.000000e-01 : f32
    %287 = vector.broadcast %cst_95 : f32 to vector<16x128xf32>
    %288 = arith.mulf %287, %286 : vector<16x128xf32>
    %289 = arith.mulf %276, %288 : vector<16x128xf32>
    %290 = arith.truncf %289 : vector<16x128xf32> to vector<16x128xbf16>
    %cst_96 = arith.constant dense<0.000000e+00> : vector<16x32xf32>
    %291 = tpu.matmul %290, %54, %cst_96 {dimension_numbers = #tpu.dot_dimension_numbers<[1], [1], [0], [0], [0, 0, 1, 0], [], []>} : vector<16x128xbf16>, vector<32x128xbf16>, vector<16x32xf32> -> vector<16x32xf32>
    %292 = vector.broadcast %71 : vector<1x32xf32> to vector<16x32xf32>
    %293 = arith.addf %291, %292 : vector<16x32xf32>
    %294 = arith.addf %293, %272 : vector<16x32xf32>
    %cst_97 = arith.constant dense<0.000000e+00> : vector<16xf32>
    %295 = vector.multi_reduction <add>, %294, %cst_97 [1] : vector<16x32xf32> to vector<16xf32>
    %296 = vector.shape_cast %295 : vector<16xf32> to vector<16x1xf32>
    %cst_98 = arith.constant 3.200000e+01 : f32
    %297 = vector.broadcast %cst_98 : f32 to vector<16x1xf32>
    %298 = arith.divf %296, %297 : vector<16x1xf32>
    %299 = vector.broadcast %298 : vector<16x1xf32> to vector<16x32xf32>
    %300 = arith.subf %294, %299 : vector<16x32xf32>
    %301 = arith.mulf %300, %300 : vector<16x32xf32>
    %cst_99 = arith.constant dense<0.000000e+00> : vector<16xf32>
    %302 = vector.multi_reduction <add>, %301, %cst_99 [1] : vector<16x32xf32> to vector<16xf32>
    %303 = vector.shape_cast %302 : vector<16xf32> to vector<16x1xf32>
    %cst_100 = arith.constant 3.200000e+01 : f32
    %304 = vector.broadcast %cst_100 : f32 to vector<16x1xf32>
    %305 = arith.divf %303, %304 : vector<16x1xf32>
    %306 = vector.broadcast %298 : vector<16x1xf32> to vector<16x32xf32>
    %307 = arith.subf %294, %306 : vector<16x32xf32>
    %cst_101 = arith.constant 9.99999996E-13 : f32
    %308 = vector.broadcast %cst_101 : f32 to vector<16x1xf32>
    %309 = arith.addf %305, %308 : vector<16x1xf32>
    %310 = math.rsqrt %309 : vector<16x1xf32>
    %311 = vector.broadcast %310 : vector<16x1xf32> to vector<16x32xf32>
    %312 = arith.mulf %307, %311 : vector<16x32xf32>
    %313 = vector.broadcast %74 : vector<1x32xf32> to vector<16x32xf32>
    %314 = arith.mulf %312, %313 : vector<16x32xf32>
    %315 = vector.broadcast %77 : vector<1x32xf32> to vector<16x32xf32>
    %316 = arith.addf %314, %315 : vector<16x32xf32>
    %c1_102 = arith.constant 1 : index
    %c0_103 = arith.constant 0 : index
    %c0_104 = arith.constant 0 : index
    %317 = vector.load %arg3[%c1_102, %c0_103, %c0_104] : memref<2x32x384xbf16, #tpu.memory_space<vmem>>, vector<1x32x384xbf16>
    %318 = vector.shape_cast %317 : vector<1x32x384xbf16> to vector<32x384xbf16>
    %319 = vector.extract_strided_slice %318 {offsets = [0, 0], sizes = [32, 96], strides = [1, 1]} : vector<32x384xbf16> to vector<32x96xbf16>
    %320 = vector.extract_strided_slice %318 {offsets = [0, 96], sizes = [32, 32], strides = [1, 1]} : vector<32x384xbf16> to vector<32x32xbf16>
    %321 = vector.extract_strided_slice %318 {offsets = [0, 128], sizes = [32, 128], strides = [1, 1]} : vector<32x384xbf16> to vector<32x128xbf16>
    %322 = vector.extract_strided_slice %318 {offsets = [0, 256], sizes = [32, 128], strides = [1, 1]} : vector<32x384xbf16> to vector<32x128xbf16>
    %c1_105 = arith.constant 1 : index
    %c0_106 = arith.constant 0 : index
    %c0_107 = arith.constant 0 : index
    %c0_108 = arith.constant 0 : index
    %323 = vector.load %arg4[%c1_105, %c0_106, %c0_107, %c0_108] : memref<2x8x1x128xf32, #tpu.memory_space<vmem>>, vector<1x1x1x128xf32>
    %324 = vector.shape_cast %323 : vector<1x1x1x128xf32> to vector<1x128xf32>
    %325 = vector.extract_strided_slice %324 {offsets = [0, 0], sizes = [1, 96], strides = [1, 1]} : vector<1x128xf32> to vector<1x96xf32>
    %c1_109 = arith.constant 1 : index
    %c1_110 = arith.constant 1 : index
    %c0_111 = arith.constant 0 : index
    %c0_112 = arith.constant 0 : index
    %326 = vector.load %arg4[%c1_109, %c1_110, %c0_111, %c0_112] : memref<2x8x1x128xf32, #tpu.memory_space<vmem>>, vector<1x1x1x128xf32>
    %327 = vector.shape_cast %326 : vector<1x1x1x128xf32> to vector<1x128xf32>
    %328 = vector.extract_strided_slice %327 {offsets = [0, 0], sizes = [1, 32], strides = [1, 1]} : vector<1x128xf32> to vector<1x32xf32>
    %c1_113 = arith.constant 1 : index
    %c2_114 = arith.constant 2 : index
    %c0_115 = arith.constant 0 : index
    %c0_116 = arith.constant 0 : index
    %329 = vector.load %arg4[%c1_113, %c2_114, %c0_115, %c0_116] : memref<2x8x1x128xf32, #tpu.memory_space<vmem>>, vector<1x1x1x128xf32>
    %330 = vector.shape_cast %329 : vector<1x1x1x128xf32> to vector<1x128xf32>
    %331 = vector.extract_strided_slice %330 {offsets = [0, 0], sizes = [1, 32], strides = [1, 1]} : vector<1x128xf32> to vector<1x32xf32>
    %c1_117 = arith.constant 1 : index
    %c3_118 = arith.constant 3 : index
    %c0_119 = arith.constant 0 : index
    %c0_120 = arith.constant 0 : index
    %332 = vector.load %arg4[%c1_117, %c3_118, %c0_119, %c0_120] : memref<2x8x1x128xf32, #tpu.memory_space<vmem>>, vector<1x1x1x128xf32>
    %333 = vector.shape_cast %332 : vector<1x1x1x128xf32> to vector<1x128xf32>
    %334 = vector.extract_strided_slice %333 {offsets = [0, 0], sizes = [1, 32], strides = [1, 1]} : vector<1x128xf32> to vector<1x32xf32>
    %c1_121 = arith.constant 1 : index
    %c4_122 = arith.constant 4 : index
    %c0_123 = arith.constant 0 : index
    %c0_124 = arith.constant 0 : index
    %335 = vector.load %arg4[%c1_121, %c4_122, %c0_123, %c0_124] : memref<2x8x1x128xf32, #tpu.memory_space<vmem>>, vector<1x1x1x128xf32>
    %336 = vector.shape_cast %335 : vector<1x1x1x128xf32> to vector<1x128xf32>
    %c1_125 = arith.constant 1 : index
    %c5_126 = arith.constant 5 : index
    %c0_127 = arith.constant 0 : index
    %c0_128 = arith.constant 0 : index
    %337 = vector.load %arg4[%c1_125, %c5_126, %c0_127, %c0_128] : memref<2x8x1x128xf32, #tpu.memory_space<vmem>>, vector<1x1x1x128xf32>
    %338 = vector.shape_cast %337 : vector<1x1x1x128xf32> to vector<1x128xf32>
    %339 = vector.extract_strided_slice %338 {offsets = [0, 0], sizes = [1, 32], strides = [1, 1]} : vector<1x128xf32> to vector<1x32xf32>
    %c1_129 = arith.constant 1 : index
    %c6_130 = arith.constant 6 : index
    %c0_131 = arith.constant 0 : index
    %c0_132 = arith.constant 0 : index
    %340 = vector.load %arg4[%c1_129, %c6_130, %c0_131, %c0_132] : memref<2x8x1x128xf32, #tpu.memory_space<vmem>>, vector<1x1x1x128xf32>
    %341 = vector.shape_cast %340 : vector<1x1x1x128xf32> to vector<1x128xf32>
    %342 = vector.extract_strided_slice %341 {offsets = [0, 0], sizes = [1, 32], strides = [1, 1]} : vector<1x128xf32> to vector<1x32xf32>
    %c1_133 = arith.constant 1 : index
    %c7_134 = arith.constant 7 : index
    %c0_135 = arith.constant 0 : index
    %c0_136 = arith.constant 0 : index
    %343 = vector.load %arg4[%c1_133, %c7_134, %c0_135, %c0_136] : memref<2x8x1x128xf32, #tpu.memory_space<vmem>>, vector<1x1x1x128xf32>
    %344 = vector.shape_cast %343 : vector<1x1x1x128xf32> to vector<1x128xf32>
    %345 = vector.extract_strided_slice %344 {offsets = [0, 0], sizes = [1, 32], strides = [1, 1]} : vector<1x128xf32> to vector<1x32xf32>
    %346 = arith.truncf %316 : vector<16x32xf32> to vector<16x32xbf16>
    %cst_137 = arith.constant dense<0.000000e+00> : vector<16x96xf32>
    %347 = tpu.matmul %346, %319, %cst_137 {dimension_numbers = #tpu.dot_dimension_numbers<[1], [0], [0], [1], [0, 0, 1, 1], [], []>} : vector<16x32xbf16>, vector<32x96xbf16>, vector<16x96xf32> -> vector<16x96xf32>
    %348 = vector.broadcast %325 : vector<1x96xf32> to vector<16x96xf32>
    %349 = arith.addf %347, %348 : vector<16x96xf32>
    %350 = arith.truncf %349 : vector<16x96xf32> to vector<16x96xbf16>
    %351 = vector.extract_strided_slice %350 {offsets = [0, 0], sizes = [8, 8], strides = [1, 1]} : vector<16x96xbf16> to vector<8x8xbf16>
    %352 = vector.extract_strided_slice %350 {offsets = [0, 32], sizes = [8, 8], strides = [1, 1]} : vector<16x96xbf16> to vector<8x8xbf16>
    %353 = vector.extract_strided_slice %350 {offsets = [0, 64], sizes = [8, 8], strides = [1, 1]} : vector<16x96xbf16> to vector<8x8xbf16>
    %cst_138 = arith.constant dense<0.000000e+00> : vector<8x8xf32>
    %354 = tpu.matmul %351, %352, %cst_138 {dimension_numbers = #tpu.dot_dimension_numbers<[1], [1], [0], [0], [0, 0, 1, 0], [], []>} : vector<8x8xbf16>, vector<8x8xbf16>, vector<8x8xf32> -> vector<8x8xf32>
    %cst_139 = arith.constant 0.353553385 : f32
    %355 = vector.broadcast %cst_139 : f32 to vector<8x8xf32>
    %356 = arith.mulf %354, %355 : vector<8x8xf32>
    %357 = vector.broadcast %47 : vector<1x8xf32> to vector<8x8xf32>
    %358 = arith.addf %356, %357 : vector<8x8xf32>
    %cst_140 = arith.constant dense<0xFF800000> : vector<8xf32>
    %359 = vector.multi_reduction <maximumf>, %358, %cst_140 [1] : vector<8x8xf32> to vector<8xf32>
    %360 = vector.shape_cast %359 : vector<8xf32> to vector<8x1xf32>
    %361 = vector.broadcast %360 : vector<8x1xf32> to vector<8x8xf32>
    %362 = arith.subf %358, %361 : vector<8x8xf32>
    %363 = math.exp %362 : vector<8x8xf32>
    %cst_141 = arith.constant dense<0.000000e+00> : vector<8xf32>
    %364 = vector.multi_reduction <add>, %363, %cst_141 [1] : vector<8x8xf32> to vector<8xf32>
    %365 = vector.shape_cast %364 : vector<8xf32> to vector<8x1xf32>
    %366 = tpu.reciprocal %365 {approx = true} : vector<8x1xf32> -> vector<8x1xf32>
    %367 = vector.broadcast %366 : vector<8x1xf32> to vector<8x8xf32>
    %368 = arith.mulf %363, %367 : vector<8x8xf32>
    %369 = arith.truncf %368 : vector<8x8xf32> to vector<8x8xbf16>
    %cst_142 = arith.constant dense<0.000000e+00> : vector<8x8xf32>
    %370 = tpu.matmul %369, %353, %cst_142 {dimension_numbers = #tpu.dot_dimension_numbers<[1], [0], [0], [1], [0, 0, 1, 1], [], []>} : vector<8x8xbf16>, vector<8x8xbf16>, vector<8x8xf32> -> vector<8x8xf32>
    %371 = vector.extract_strided_slice %350 {offsets = [0, 8], sizes = [8, 8], strides = [1, 1]} : vector<16x96xbf16> to vector<8x8xbf16>
    %372 = vector.extract_strided_slice %350 {offsets = [0, 40], sizes = [8, 8], strides = [1, 1]} : vector<16x96xbf16> to vector<8x8xbf16>
    %373 = vector.extract_strided_slice %350 {offsets = [0, 72], sizes = [8, 8], strides = [1, 1]} : vector<16x96xbf16> to vector<8x8xbf16>
    %cst_143 = arith.constant dense<0.000000e+00> : vector<8x8xf32>
    %374 = tpu.matmul %371, %372, %cst_143 {dimension_numbers = #tpu.dot_dimension_numbers<[1], [1], [0], [0], [0, 0, 1, 0], [], []>} : vector<8x8xbf16>, vector<8x8xbf16>, vector<8x8xf32> -> vector<8x8xf32>
    %cst_144 = arith.constant 0.353553385 : f32
    %375 = vector.broadcast %cst_144 : f32 to vector<8x8xf32>
    %376 = arith.mulf %374, %375 : vector<8x8xf32>
    %377 = vector.broadcast %47 : vector<1x8xf32> to vector<8x8xf32>
    %378 = arith.addf %376, %377 : vector<8x8xf32>
    %cst_145 = arith.constant dense<0xFF800000> : vector<8xf32>
    %379 = vector.multi_reduction <maximumf>, %378, %cst_145 [1] : vector<8x8xf32> to vector<8xf32>
    %380 = vector.shape_cast %379 : vector<8xf32> to vector<8x1xf32>
    %381 = vector.broadcast %380 : vector<8x1xf32> to vector<8x8xf32>
    %382 = arith.subf %378, %381 : vector<8x8xf32>
    %383 = math.exp %382 : vector<8x8xf32>
    %cst_146 = arith.constant dense<0.000000e+00> : vector<8xf32>
    %384 = vector.multi_reduction <add>, %383, %cst_146 [1] : vector<8x8xf32> to vector<8xf32>
    %385 = vector.shape_cast %384 : vector<8xf32> to vector<8x1xf32>
    %386 = tpu.reciprocal %385 {approx = true} : vector<8x1xf32> -> vector<8x1xf32>
    %387 = vector.broadcast %386 : vector<8x1xf32> to vector<8x8xf32>
    %388 = arith.mulf %383, %387 : vector<8x8xf32>
    %389 = arith.truncf %388 : vector<8x8xf32> to vector<8x8xbf16>
    %cst_147 = arith.constant dense<0.000000e+00> : vector<8x8xf32>
    %390 = tpu.matmul %389, %373, %cst_147 {dimension_numbers = #tpu.dot_dimension_numbers<[1], [0], [0], [1], [0, 0, 1, 1], [], []>} : vector<8x8xbf16>, vector<8x8xbf16>, vector<8x8xf32> -> vector<8x8xf32>
    %391 = vector.extract_strided_slice %350 {offsets = [0, 16], sizes = [8, 8], strides = [1, 1]} : vector<16x96xbf16> to vector<8x8xbf16>
    %392 = vector.extract_strided_slice %350 {offsets = [0, 48], sizes = [8, 8], strides = [1, 1]} : vector<16x96xbf16> to vector<8x8xbf16>
    %393 = vector.extract_strided_slice %350 {offsets = [0, 80], sizes = [8, 8], strides = [1, 1]} : vector<16x96xbf16> to vector<8x8xbf16>
    %cst_148 = arith.constant dense<0.000000e+00> : vector<8x8xf32>
    %394 = tpu.matmul %391, %392, %cst_148 {dimension_numbers = #tpu.dot_dimension_numbers<[1], [1], [0], [0], [0, 0, 1, 0], [], []>} : vector<8x8xbf16>, vector<8x8xbf16>, vector<8x8xf32> -> vector<8x8xf32>
    %cst_149 = arith.constant 0.353553385 : f32
    %395 = vector.broadcast %cst_149 : f32 to vector<8x8xf32>
    %396 = arith.mulf %394, %395 : vector<8x8xf32>
    %397 = vector.broadcast %47 : vector<1x8xf32> to vector<8x8xf32>
    %398 = arith.addf %396, %397 : vector<8x8xf32>
    %cst_150 = arith.constant dense<0xFF800000> : vector<8xf32>
    %399 = vector.multi_reduction <maximumf>, %398, %cst_150 [1] : vector<8x8xf32> to vector<8xf32>
    %400 = vector.shape_cast %399 : vector<8xf32> to vector<8x1xf32>
    %401 = vector.broadcast %400 : vector<8x1xf32> to vector<8x8xf32>
    %402 = arith.subf %398, %401 : vector<8x8xf32>
    %403 = math.exp %402 : vector<8x8xf32>
    %cst_151 = arith.constant dense<0.000000e+00> : vector<8xf32>
    %404 = vector.multi_reduction <add>, %403, %cst_151 [1] : vector<8x8xf32> to vector<8xf32>
    %405 = vector.shape_cast %404 : vector<8xf32> to vector<8x1xf32>
    %406 = tpu.reciprocal %405 {approx = true} : vector<8x1xf32> -> vector<8x1xf32>
    %407 = vector.broadcast %406 : vector<8x1xf32> to vector<8x8xf32>
    %408 = arith.mulf %403, %407 : vector<8x8xf32>
    %409 = arith.truncf %408 : vector<8x8xf32> to vector<8x8xbf16>
    %cst_152 = arith.constant dense<0.000000e+00> : vector<8x8xf32>
    %410 = tpu.matmul %409, %393, %cst_152 {dimension_numbers = #tpu.dot_dimension_numbers<[1], [0], [0], [1], [0, 0, 1, 1], [], []>} : vector<8x8xbf16>, vector<8x8xbf16>, vector<8x8xf32> -> vector<8x8xf32>
    %411 = vector.extract_strided_slice %350 {offsets = [0, 24], sizes = [8, 8], strides = [1, 1]} : vector<16x96xbf16> to vector<8x8xbf16>
    %412 = vector.extract_strided_slice %350 {offsets = [0, 56], sizes = [8, 8], strides = [1, 1]} : vector<16x96xbf16> to vector<8x8xbf16>
    %413 = vector.extract_strided_slice %350 {offsets = [0, 88], sizes = [8, 8], strides = [1, 1]} : vector<16x96xbf16> to vector<8x8xbf16>
    %cst_153 = arith.constant dense<0.000000e+00> : vector<8x8xf32>
    %414 = tpu.matmul %411, %412, %cst_153 {dimension_numbers = #tpu.dot_dimension_numbers<[1], [1], [0], [0], [0, 0, 1, 0], [], []>} : vector<8x8xbf16>, vector<8x8xbf16>, vector<8x8xf32> -> vector<8x8xf32>
    %cst_154 = arith.constant 0.353553385 : f32
    %415 = vector.broadcast %cst_154 : f32 to vector<8x8xf32>
    %416 = arith.mulf %414, %415 : vector<8x8xf32>
    %417 = vector.broadcast %47 : vector<1x8xf32> to vector<8x8xf32>
    %418 = arith.addf %416, %417 : vector<8x8xf32>
    %cst_155 = arith.constant dense<0xFF800000> : vector<8xf32>
    %419 = vector.multi_reduction <maximumf>, %418, %cst_155 [1] : vector<8x8xf32> to vector<8xf32>
    %420 = vector.shape_cast %419 : vector<8xf32> to vector<8x1xf32>
    %421 = vector.broadcast %420 : vector<8x1xf32> to vector<8x8xf32>
    %422 = arith.subf %418, %421 : vector<8x8xf32>
    %423 = math.exp %422 : vector<8x8xf32>
    %cst_156 = arith.constant dense<0.000000e+00> : vector<8xf32>
    %424 = vector.multi_reduction <add>, %423, %cst_156 [1] : vector<8x8xf32> to vector<8xf32>
    %425 = vector.shape_cast %424 : vector<8xf32> to vector<8x1xf32>
    %426 = tpu.reciprocal %425 {approx = true} : vector<8x1xf32> -> vector<8x1xf32>
    %427 = vector.broadcast %426 : vector<8x1xf32> to vector<8x8xf32>
    %428 = arith.mulf %423, %427 : vector<8x8xf32>
    %429 = arith.truncf %428 : vector<8x8xf32> to vector<8x8xbf16>
    %cst_157 = arith.constant dense<0.000000e+00> : vector<8x8xf32>
    %430 = tpu.matmul %429, %413, %cst_157 {dimension_numbers = #tpu.dot_dimension_numbers<[1], [0], [0], [1], [0, 0, 1, 1], [], []>} : vector<8x8xbf16>, vector<8x8xbf16>, vector<8x8xf32> -> vector<8x8xf32>
    %431 = tpu.concatenate %370, %390, %410, %430 in 1 : vector<8x8xf32>, vector<8x8xf32>, vector<8x8xf32>, vector<8x8xf32> -> vector<8x32xf32>
    %432 = vector.extract_strided_slice %350 {offsets = [8, 0], sizes = [8, 8], strides = [1, 1]} : vector<16x96xbf16> to vector<8x8xbf16>
    %433 = vector.extract_strided_slice %350 {offsets = [8, 32], sizes = [8, 8], strides = [1, 1]} : vector<16x96xbf16> to vector<8x8xbf16>
    %434 = vector.extract_strided_slice %350 {offsets = [8, 64], sizes = [8, 8], strides = [1, 1]} : vector<16x96xbf16> to vector<8x8xbf16>
    %cst_158 = arith.constant dense<0.000000e+00> : vector<8x8xf32>
    %435 = tpu.matmul %432, %433, %cst_158 {dimension_numbers = #tpu.dot_dimension_numbers<[1], [1], [0], [0], [0, 0, 1, 0], [], []>} : vector<8x8xbf16>, vector<8x8xbf16>, vector<8x8xf32> -> vector<8x8xf32>
    %cst_159 = arith.constant 0.353553385 : f32
    %436 = vector.broadcast %cst_159 : f32 to vector<8x8xf32>
    %437 = arith.mulf %435, %436 : vector<8x8xf32>
    %438 = vector.broadcast %48 : vector<1x8xf32> to vector<8x8xf32>
    %439 = arith.addf %437, %438 : vector<8x8xf32>
    %cst_160 = arith.constant dense<0xFF800000> : vector<8xf32>
    %440 = vector.multi_reduction <maximumf>, %439, %cst_160 [1] : vector<8x8xf32> to vector<8xf32>
    %441 = vector.shape_cast %440 : vector<8xf32> to vector<8x1xf32>
    %442 = vector.broadcast %441 : vector<8x1xf32> to vector<8x8xf32>
    %443 = arith.subf %439, %442 : vector<8x8xf32>
    %444 = math.exp %443 : vector<8x8xf32>
    %cst_161 = arith.constant dense<0.000000e+00> : vector<8xf32>
    %445 = vector.multi_reduction <add>, %444, %cst_161 [1] : vector<8x8xf32> to vector<8xf32>
    %446 = vector.shape_cast %445 : vector<8xf32> to vector<8x1xf32>
    %447 = tpu.reciprocal %446 {approx = true} : vector<8x1xf32> -> vector<8x1xf32>
    %448 = vector.broadcast %447 : vector<8x1xf32> to vector<8x8xf32>
    %449 = arith.mulf %444, %448 : vector<8x8xf32>
    %450 = arith.truncf %449 : vector<8x8xf32> to vector<8x8xbf16>
    %cst_162 = arith.constant dense<0.000000e+00> : vector<8x8xf32>
    %451 = tpu.matmul %450, %434, %cst_162 {dimension_numbers = #tpu.dot_dimension_numbers<[1], [0], [0], [1], [0, 0, 1, 1], [], []>} : vector<8x8xbf16>, vector<8x8xbf16>, vector<8x8xf32> -> vector<8x8xf32>
    %452 = vector.extract_strided_slice %350 {offsets = [8, 8], sizes = [8, 8], strides = [1, 1]} : vector<16x96xbf16> to vector<8x8xbf16>
    %453 = vector.extract_strided_slice %350 {offsets = [8, 40], sizes = [8, 8], strides = [1, 1]} : vector<16x96xbf16> to vector<8x8xbf16>
    %454 = vector.extract_strided_slice %350 {offsets = [8, 72], sizes = [8, 8], strides = [1, 1]} : vector<16x96xbf16> to vector<8x8xbf16>
    %cst_163 = arith.constant dense<0.000000e+00> : vector<8x8xf32>
    %455 = tpu.matmul %452, %453, %cst_163 {dimension_numbers = #tpu.dot_dimension_numbers<[1], [1], [0], [0], [0, 0, 1, 0], [], []>} : vector<8x8xbf16>, vector<8x8xbf16>, vector<8x8xf32> -> vector<8x8xf32>
    %cst_164 = arith.constant 0.353553385 : f32
    %456 = vector.broadcast %cst_164 : f32 to vector<8x8xf32>
    %457 = arith.mulf %455, %456 : vector<8x8xf32>
    %458 = vector.broadcast %48 : vector<1x8xf32> to vector<8x8xf32>
    %459 = arith.addf %457, %458 : vector<8x8xf32>
    %cst_165 = arith.constant dense<0xFF800000> : vector<8xf32>
    %460 = vector.multi_reduction <maximumf>, %459, %cst_165 [1] : vector<8x8xf32> to vector<8xf32>
    %461 = vector.shape_cast %460 : vector<8xf32> to vector<8x1xf32>
    %462 = vector.broadcast %461 : vector<8x1xf32> to vector<8x8xf32>
    %463 = arith.subf %459, %462 : vector<8x8xf32>
    %464 = math.exp %463 : vector<8x8xf32>
    %cst_166 = arith.constant dense<0.000000e+00> : vector<8xf32>
    %465 = vector.multi_reduction <add>, %464, %cst_166 [1] : vector<8x8xf32> to vector<8xf32>
    %466 = vector.shape_cast %465 : vector<8xf32> to vector<8x1xf32>
    %467 = tpu.reciprocal %466 {approx = true} : vector<8x1xf32> -> vector<8x1xf32>
    %468 = vector.broadcast %467 : vector<8x1xf32> to vector<8x8xf32>
    %469 = arith.mulf %464, %468 : vector<8x8xf32>
    %470 = arith.truncf %469 : vector<8x8xf32> to vector<8x8xbf16>
    %cst_167 = arith.constant dense<0.000000e+00> : vector<8x8xf32>
    %471 = tpu.matmul %470, %454, %cst_167 {dimension_numbers = #tpu.dot_dimension_numbers<[1], [0], [0], [1], [0, 0, 1, 1], [], []>} : vector<8x8xbf16>, vector<8x8xbf16>, vector<8x8xf32> -> vector<8x8xf32>
    %472 = vector.extract_strided_slice %350 {offsets = [8, 16], sizes = [8, 8], strides = [1, 1]} : vector<16x96xbf16> to vector<8x8xbf16>
    %473 = vector.extract_strided_slice %350 {offsets = [8, 48], sizes = [8, 8], strides = [1, 1]} : vector<16x96xbf16> to vector<8x8xbf16>
    %474 = vector.extract_strided_slice %350 {offsets = [8, 80], sizes = [8, 8], strides = [1, 1]} : vector<16x96xbf16> to vector<8x8xbf16>
    %cst_168 = arith.constant dense<0.000000e+00> : vector<8x8xf32>
    %475 = tpu.matmul %472, %473, %cst_168 {dimension_numbers = #tpu.dot_dimension_numbers<[1], [1], [0], [0], [0, 0, 1, 0], [], []>} : vector<8x8xbf16>, vector<8x8xbf16>, vector<8x8xf32> -> vector<8x8xf32>
    %cst_169 = arith.constant 0.353553385 : f32
    %476 = vector.broadcast %cst_169 : f32 to vector<8x8xf32>
    %477 = arith.mulf %475, %476 : vector<8x8xf32>
    %478 = vector.broadcast %48 : vector<1x8xf32> to vector<8x8xf32>
    %479 = arith.addf %477, %478 : vector<8x8xf32>
    %cst_170 = arith.constant dense<0xFF800000> : vector<8xf32>
    %480 = vector.multi_reduction <maximumf>, %479, %cst_170 [1] : vector<8x8xf32> to vector<8xf32>
    %481 = vector.shape_cast %480 : vector<8xf32> to vector<8x1xf32>
    %482 = vector.broadcast %481 : vector<8x1xf32> to vector<8x8xf32>
    %483 = arith.subf %479, %482 : vector<8x8xf32>
    %484 = math.exp %483 : vector<8x8xf32>
    %cst_171 = arith.constant dense<0.000000e+00> : vector<8xf32>
    %485 = vector.multi_reduction <add>, %484, %cst_171 [1] : vector<8x8xf32> to vector<8xf32>
    %486 = vector.shape_cast %485 : vector<8xf32> to vector<8x1xf32>
    %487 = tpu.reciprocal %486 {approx = true} : vector<8x1xf32> -> vector<8x1xf32>
    %488 = vector.broadcast %487 : vector<8x1xf32> to vector<8x8xf32>
    %489 = arith.mulf %484, %488 : vector<8x8xf32>
    %490 = arith.truncf %489 : vector<8x8xf32> to vector<8x8xbf16>
    %cst_172 = arith.constant dense<0.000000e+00> : vector<8x8xf32>
    %491 = tpu.matmul %490, %474, %cst_172 {dimension_numbers = #tpu.dot_dimension_numbers<[1], [0], [0], [1], [0, 0, 1, 1], [], []>} : vector<8x8xbf16>, vector<8x8xbf16>, vector<8x8xf32> -> vector<8x8xf32>
    %492 = vector.extract_strided_slice %350 {offsets = [8, 24], sizes = [8, 8], strides = [1, 1]} : vector<16x96xbf16> to vector<8x8xbf16>
    %493 = vector.extract_strided_slice %350 {offsets = [8, 56], sizes = [8, 8], strides = [1, 1]} : vector<16x96xbf16> to vector<8x8xbf16>
    %494 = vector.extract_strided_slice %350 {offsets = [8, 88], sizes = [8, 8], strides = [1, 1]} : vector<16x96xbf16> to vector<8x8xbf16>
    %cst_173 = arith.constant dense<0.000000e+00> : vector<8x8xf32>
    %495 = tpu.matmul %492, %493, %cst_173 {dimension_numbers = #tpu.dot_dimension_numbers<[1], [1], [0], [0], [0, 0, 1, 0], [], []>} : vector<8x8xbf16>, vector<8x8xbf16>, vector<8x8xf32> -> vector<8x8xf32>
    %cst_174 = arith.constant 0.353553385 : f32
    %496 = vector.broadcast %cst_174 : f32 to vector<8x8xf32>
    %497 = arith.mulf %495, %496 : vector<8x8xf32>
    %498 = vector.broadcast %48 : vector<1x8xf32> to vector<8x8xf32>
    %499 = arith.addf %497, %498 : vector<8x8xf32>
    %cst_175 = arith.constant dense<0xFF800000> : vector<8xf32>
    %500 = vector.multi_reduction <maximumf>, %499, %cst_175 [1] : vector<8x8xf32> to vector<8xf32>
    %501 = vector.shape_cast %500 : vector<8xf32> to vector<8x1xf32>
    %502 = vector.broadcast %501 : vector<8x1xf32> to vector<8x8xf32>
    %503 = arith.subf %499, %502 : vector<8x8xf32>
    %504 = math.exp %503 : vector<8x8xf32>
    %cst_176 = arith.constant dense<0.000000e+00> : vector<8xf32>
    %505 = vector.multi_reduction <add>, %504, %cst_176 [1] : vector<8x8xf32> to vector<8xf32>
    %506 = vector.shape_cast %505 : vector<8xf32> to vector<8x1xf32>
    %507 = tpu.reciprocal %506 {approx = true} : vector<8x1xf32> -> vector<8x1xf32>
    %508 = vector.broadcast %507 : vector<8x1xf32> to vector<8x8xf32>
    %509 = arith.mulf %504, %508 : vector<8x8xf32>
    %510 = arith.truncf %509 : vector<8x8xf32> to vector<8x8xbf16>
    %cst_177 = arith.constant dense<0.000000e+00> : vector<8x8xf32>
    %511 = tpu.matmul %510, %494, %cst_177 {dimension_numbers = #tpu.dot_dimension_numbers<[1], [0], [0], [1], [0, 0, 1, 1], [], []>} : vector<8x8xbf16>, vector<8x8xbf16>, vector<8x8xf32> -> vector<8x8xf32>
    %512 = tpu.concatenate %451, %471, %491, %511 in 1 : vector<8x8xf32>, vector<8x8xf32>, vector<8x8xf32>, vector<8x8xf32> -> vector<8x32xf32>
    %513 = tpu.concatenate %431, %512 in 0 : vector<8x32xf32>, vector<8x32xf32> -> vector<16x32xf32>
    %514 = arith.truncf %513 : vector<16x32xf32> to vector<16x32xbf16>
    %cst_178 = arith.constant dense<0.000000e+00> : vector<16x32xf32>
    %515 = tpu.matmul %514, %320, %cst_178 {dimension_numbers = #tpu.dot_dimension_numbers<[1], [0], [0], [1], [0, 0, 1, 1], [], []>} : vector<16x32xbf16>, vector<32x32xbf16>, vector<16x32xf32> -> vector<16x32xf32>
    %516 = vector.broadcast %328 : vector<1x32xf32> to vector<16x32xf32>
    %517 = arith.addf %515, %516 : vector<16x32xf32>
    %518 = arith.addf %517, %316 : vector<16x32xf32>
    %cst_179 = arith.constant dense<0.000000e+00> : vector<16xf32>
    %519 = vector.multi_reduction <add>, %518, %cst_179 [1] : vector<16x32xf32> to vector<16xf32>
    %520 = vector.shape_cast %519 : vector<16xf32> to vector<16x1xf32>
    %cst_180 = arith.constant 3.200000e+01 : f32
    %521 = vector.broadcast %cst_180 : f32 to vector<16x1xf32>
    %522 = arith.divf %520, %521 : vector<16x1xf32>
    %523 = vector.broadcast %522 : vector<16x1xf32> to vector<16x32xf32>
    %524 = arith.subf %518, %523 : vector<16x32xf32>
    %525 = arith.mulf %524, %524 : vector<16x32xf32>
    %cst_181 = arith.constant dense<0.000000e+00> : vector<16xf32>
    %526 = vector.multi_reduction <add>, %525, %cst_181 [1] : vector<16x32xf32> to vector<16xf32>
    %527 = vector.shape_cast %526 : vector<16xf32> to vector<16x1xf32>
    %cst_182 = arith.constant 3.200000e+01 : f32
    %528 = vector.broadcast %cst_182 : f32 to vector<16x1xf32>
    %529 = arith.divf %527, %528 : vector<16x1xf32>
    %530 = vector.broadcast %522 : vector<16x1xf32> to vector<16x32xf32>
    %531 = arith.subf %518, %530 : vector<16x32xf32>
    %cst_183 = arith.constant 9.99999996E-13 : f32
    %532 = vector.broadcast %cst_183 : f32 to vector<16x1xf32>
    %533 = arith.addf %529, %532 : vector<16x1xf32>
    %534 = math.rsqrt %533 : vector<16x1xf32>
    %535 = vector.broadcast %534 : vector<16x1xf32> to vector<16x32xf32>
    %536 = arith.mulf %531, %535 : vector<16x32xf32>
    %537 = vector.broadcast %331 : vector<1x32xf32> to vector<16x32xf32>
    %538 = arith.mulf %536, %537 : vector<16x32xf32>
    %539 = vector.broadcast %334 : vector<1x32xf32> to vector<16x32xf32>
    %540 = arith.addf %538, %539 : vector<16x32xf32>
    %541 = arith.truncf %540 : vector<16x32xf32> to vector<16x32xbf16>
    %cst_184 = arith.constant dense<0.000000e+00> : vector<16x128xf32>
    %542 = tpu.matmul %541, %321, %cst_184 {dimension_numbers = #tpu.dot_dimension_numbers<[1], [0], [0], [1], [0, 0, 1, 1], [], []>} : vector<16x32xbf16>, vector<32x128xbf16>, vector<16x128xf32> -> vector<16x128xf32>
    %543 = vector.broadcast %336 : vector<1x128xf32> to vector<16x128xf32>
    %544 = arith.addf %542, %543 : vector<16x128xf32>
    %545 = arith.mulf %544, %544 : vector<16x128xf32>
    %546 = arith.mulf %544, %545 : vector<16x128xf32>
    %cst_185 = arith.constant 4.471500e-02 : f32
    %547 = vector.broadcast %cst_185 : f32 to vector<16x128xf32>
    %548 = arith.mulf %547, %546 : vector<16x128xf32>
    %549 = arith.addf %544, %548 : vector<16x128xf32>
    %cst_186 = arith.constant 0.797884583 : f32
    %550 = vector.broadcast %cst_186 : f32 to vector<16x128xf32>
    %551 = arith.mulf %550, %549 : vector<16x128xf32>
    %552 = math.tanh %551 : vector<16x128xf32>
    %cst_187 = arith.constant 1.000000e+00 : f32
    %553 = vector.broadcast %cst_187 : f32 to vector<16x128xf32>
    %554 = arith.addf %553, %552 : vector<16x128xf32>
    %cst_188 = arith.constant 5.000000e-01 : f32
    %555 = vector.broadcast %cst_188 : f32 to vector<16x128xf32>
    %556 = arith.mulf %555, %554 : vector<16x128xf32>
    %557 = arith.mulf %544, %556 : vector<16x128xf32>
    %558 = arith.truncf %557 : vector<16x128xf32> to vector<16x128xbf16>
    %cst_189 = arith.constant dense<0.000000e+00> : vector<16x32xf32>
    %559 = tpu.matmul %558, %322, %cst_189 {dimension_numbers = #tpu.dot_dimension_numbers<[1], [1], [0], [0], [0, 0, 1, 0], [], []>} : vector<16x128xbf16>, vector<32x128xbf16>, vector<16x32xf32> -> vector<16x32xf32>
    %560 = vector.broadcast %339 : vector<1x32xf32> to vector<16x32xf32>
    %561 = arith.addf %559, %560 : vector<16x32xf32>
    %562 = arith.addf %561, %540 : vector<16x32xf32>
    %cst_190 = arith.constant dense<0.000000e+00> : vector<16xf32>
    %563 = vector.multi_reduction <add>, %562, %cst_190 [1] : vector<16x32xf32> to vector<16xf32>
    %564 = vector.shape_cast %563 : vector<16xf32> to vector<16x1xf32>
    %cst_191 = arith.constant 3.200000e+01 : f32
    %565 = vector.broadcast %cst_191 : f32 to vector<16x1xf32>
    %566 = arith.divf %564, %565 : vector<16x1xf32>
    %567 = vector.broadcast %566 : vector<16x1xf32> to vector<16x32xf32>
    %568 = arith.subf %562, %567 : vector<16x32xf32>
    %569 = arith.mulf %568, %568 : vector<16x32xf32>
    %cst_192 = arith.constant dense<0.000000e+00> : vector<16xf32>
    %570 = vector.multi_reduction <add>, %569, %cst_192 [1] : vector<16x32xf32> to vector<16xf32>
    %571 = vector.shape_cast %570 : vector<16xf32> to vector<16x1xf32>
    %cst_193 = arith.constant 3.200000e+01 : f32
    %572 = vector.broadcast %cst_193 : f32 to vector<16x1xf32>
    %573 = arith.divf %571, %572 : vector<16x1xf32>
    %574 = vector.broadcast %566 : vector<16x1xf32> to vector<16x32xf32>
    %575 = arith.subf %562, %574 : vector<16x32xf32>
    %cst_194 = arith.constant 9.99999996E-13 : f32
    %576 = vector.broadcast %cst_194 : f32 to vector<16x1xf32>
    %577 = arith.addf %573, %576 : vector<16x1xf32>
    %578 = math.rsqrt %577 : vector<16x1xf32>
    %579 = vector.broadcast %578 : vector<16x1xf32> to vector<16x32xf32>
    %580 = arith.mulf %575, %579 : vector<16x32xf32>
    %581 = vector.broadcast %342 : vector<1x32xf32> to vector<16x32xf32>
    %582 = arith.mulf %580, %581 : vector<16x32xf32>
    %583 = vector.broadcast %345 : vector<1x32xf32> to vector<16x32xf32>
    %584 = arith.addf %582, %583 : vector<16x32xf32>
    %585 = vector.extract_strided_slice %584 {offsets = [0, 0], sizes = [1, 32], strides = [1, 1]} : vector<16x32xf32> to vector<1x32xf32>
    %586 = vector.extract_strided_slice %584 {offsets = [8, 0], sizes = [1, 32], strides = [1, 1]} : vector<16x32xf32> to vector<1x32xf32>
    %587 = tpu.concatenate %585, %586 in 0 : vector<1x32xf32>, vector<1x32xf32> -> vector<2x32xf32>
    %588 = vector.extract_strided_slice %14 {offsets = [0, 0], sizes = [32, 32], strides = [1, 1]} : vector<40x128xf32> to vector<32x32xf32>
    %589 = arith.truncf %588 : vector<32x32xf32> to vector<32x32xbf16>
    %590 = vector.extract_strided_slice %14 {offsets = [0, 32], sizes = [32, 2], strides = [1, 1]} : vector<40x128xf32> to vector<32x2xf32>
    %591 = arith.truncf %590 : vector<32x2xf32> to vector<32x2xbf16>
    %592 = arith.truncf %587 : vector<2x32xf32> to vector<2x32xbf16>
    %cst_195 = arith.constant dense<0.000000e+00> : vector<2x32xf32>
    %593 = tpu.matmul %592, %589, %cst_195 {dimension_numbers = #tpu.dot_dimension_numbers<[1], [0], [0], [1], [0, 0, 1, 1], [], []>} : vector<2x32xbf16>, vector<32x32xbf16>, vector<2x32xf32> -> vector<2x32xf32>
    %594 = vector.broadcast %18 : vector<1x32xf32> to vector<2x32xf32>
    %595 = arith.addf %593, %594 : vector<2x32xf32>
    %596 = math.tanh %595 : vector<2x32xf32>
    %597 = arith.truncf %596 : vector<2x32xf32> to vector<2x32xbf16>
    %cst_196 = arith.constant dense<0.000000e+00> : vector<2x2xf32>
    %598 = tpu.matmul %597, %591, %cst_196 {dimension_numbers = #tpu.dot_dimension_numbers<[1], [0], [0], [1], [0, 0, 1, 1], [], []>} : vector<2x32xbf16>, vector<32x2xbf16>, vector<2x2xf32> -> vector<2x2xf32>
    %599 = vector.broadcast %19 : vector<1x2xf32> to vector<2x2xf32>
    %600 = arith.addf %598, %599 : vector<2x2xf32>
    %cst_197 = arith.constant dense<0xFF800000> : vector<2xf32>
    %601 = vector.multi_reduction <maximumf>, %600, %cst_197 [1] : vector<2x2xf32> to vector<2xf32>
    %602 = vector.shape_cast %601 : vector<2xf32> to vector<2x1xf32>
    %603 = vector.broadcast %602 : vector<2x1xf32> to vector<2x2xf32>
    %604 = arith.subf %600, %603 : vector<2x2xf32>
    %605 = math.exp %604 : vector<2x2xf32>
    %cst_198 = arith.constant dense<0.000000e+00> : vector<2xf32>
    %606 = vector.multi_reduction <add>, %605, %cst_198 [1] : vector<2x2xf32> to vector<2xf32>
    %607 = vector.shape_cast %606 : vector<2xf32> to vector<2x1xf32>
    %608 = tpu.reciprocal %607 {approx = true} : vector<2x1xf32> -> vector<2x1xf32>
    %609 = vector.broadcast %608 : vector<2x1xf32> to vector<2x2xf32>
    %610 = arith.mulf %605, %609 : vector<2x2xf32>
    %c0_199 = arith.constant 0 : index
    %c0_200 = arith.constant 0 : index
    %611 = vector.load %arg6[%c0_199, %c0_200] : memref<2x2xf32, #tpu.memory_space<vmem>>, vector<2x2xf32>
    tpu.vector_store %arg6[%c0_199, %c0_200], %610 {strides = array<i32>} : memref<2x2xf32, #tpu.memory_space<vmem>>, vector<2x2xf32>,
    return
  }
}

</mosaic_0001>

<llo_original>
// kernel: forward.1
$region0: #{forward.1}
  #allocation0 [shape = 'u32[]', space=smem, size = 0x4, offset = 0x4, fixed_abs, tag = 'smem constant byte address 0x4 - core index']
  #allocation1 [shape = 'u32[72,128]{1,0:T(1,128)}', space=vmem, size = 0x9000, scoped, tag = 'internal scratch']
  %s0 = inlined_call_operand.vmem [shape: s32[16,1], index: 0, kind: input, shape index: {}]
  %s1 = inlined_call_operand.vmem [shape: f32[2,8], index: 1, kind: input, shape index: {}]
  %s2 = inlined_call_operand.vmem [shape: f32[146,32], index: 2, kind: input, shape index: {}]
  %s3 = inlined_call_operand.vmem [shape: bf16[2,32,384], index: 3, kind: input, shape index: {}]
  %s4 = inlined_call_operand.vmem [shape: f32[2,8,1,128], index: 4, kind: input, shape index: {}]
  %s5 = inlined_call_operand.vmem [shape: f32[40,128], index: 5, kind: input, shape index: {}]
  %s6 = inlined_call_operand.hbm [shape: f32[2,2], index: 6, kind: output, shape index: {}]
  %s7 = sld [smem:[#allocation0]]
  $region34: #{forward.1} parent=0
    _
  %s9 = ssub.s32 1, %s7
  %s10 = scalar_select 0, %s9, %s7
  $region1: #{forward.1} parent=0
    #allocation2 [shape = 'u8[1024]{0}', space=vmem, size = 0x400, scoped, tag = 'output window, operand 0, single buffered']
    #allocation3 [shape = 's32[1]{0}', space=sflag, size = 0x4, scoped, tag = 'scoped memory for forward.1']
    %11 = vsyncpa [#allocation3], 0
    // Predicated region
    $region2: #{forward.1} parent=1 // pred_check
      _
    $region3: #{forward.1} parent=1 // pred_check_branch
      %13 = sbr.rel (0) target = $region5
    $region4: #{forward.1} parent=1 // pred_region
      _
    $region5: #{forward.1} parent=1 // pred_fallthru
      _
    // Predicated region
    $region6: #{forward.1} parent=1 // pred_check
      _
    $region7: #{forward.1} parent=1 // pred_check_branch
      %15 = sbr.rel (0) target = $region9
    $region8: #{forward.1} parent=1 // pred_region
      _
    $region9: #{forward.1} parent=1 // pred_fallthru
      _
    // Predicated region
    $region10: #{forward.1} parent=1 // pred_check
      _
    $region11: #{forward.1} parent=1 // pred_check_branch
      %17 = sbr.rel (0) target = $region13
    $region12: #{forward.1} parent=1 // pred_region
      _
    $region13: #{forward.1} parent=1 // pred_fallthru
      _
    // Predicated region
    $region14: #{forward.1} parent=1 // pred_check
      _
    $region15: #{forward.1} parent=1 // pred_check_branch
      %19 = sbr.rel (0) target = $region17
    $region16: #{forward.1} parent=1 // pred_region
      _
    $region17: #{forward.1} parent=1 // pred_fallthru
      _
    // Predicated region
    $region18: #{forward.1} parent=1 // pred_check
      _
    $region19: #{forward.1} parent=1 // pred_check_branch
      %21 = sbr.rel (0) target = $region21
    $region20: #{forward.1} parent=1 // pred_region
      _
    $region21: #{forward.1} parent=1 // pred_fallthru
      _
    // Predicated region
    $region22: #{forward.1} parent=1 // pred_check
      _
    $region23: #{forward.1} parent=1 // pred_check_branch
      %23 = sbr.rel (0) target = $region25
    $region24: #{forward.1} parent=1 // pred_region
      _
    $region25: #{forward.1} parent=1 // pred_fallthru
      _
    %v25 = vld [vmem:[%s0] sm:$0xff]
    %v26 = vld [vmem:[%s0 + $0x8] sm:$0xff]
    %v27 = vlaneseq
    %v28 = vand.u32 %v27, 127
    %29 = vset.pattern.permute.xlu0 0
    %30 = vperm.xlu0 %29, %v25
    %v31 = vpop.permute.xlu0 %30
    %32 = vset.pattern.permute.xlu0 0
    %33 = vperm.xlu0 %32, %v26
    %v34 = vpop.permute.xlu0 %33
    %vm35 = vcmp.eq.s32.totalorder %v31, %v28
    %vm36 = vcmp.eq.s32.totalorder %v34, %v28
    %v37 = vsel %vm35, 1, 0
    %v38 = vsel %vm36, 1, 0
    %v39 = vcvt.s32.f32 %v37
    %v40 = vcvt.s32.f32 %v38
    %v41 = vld [vmem:[%s2] sm:$0xff]
    %v42 = vld [vmem:[%s2 + $0x8] sm:$0xff]
    %v43 = vld [vmem:[%s2 + $0x10] sm:$0xff]
    %v44 = vld [vmem:[%s2 + $0x18] sm:$0xff]
    %v45 = vld [vmem:[%s2 + $0x20] sm:$0xff]
    %v46 = vld [vmem:[%s2 + $0x28] sm:$0xff]
    %v47 = vld [vmem:[%s2 + $0x30] sm:$0xff]
    %v48 = vld [vmem:[%s2 + $0x38] sm:$0xff]
    %v49 = vld [vmem:[%s2 + $0x40] sm:$0xff]
    %v50 = vld [vmem:[%s2 + $0x48] sm:$0xff]
    %v51 = vld [vmem:[%s2 + $0x50] sm:$0xff]
    %v52 = vld [vmem:[%s2 + $0x58] sm:$0xff]
    %v53 = vld [vmem:[%s2 + $0x60] sm:$0xff]
    %v54 = vld [vmem:[%s2 + $0x68] sm:$0xff]
    %v55 = vld [vmem:[%s2 + $0x70] sm:$0xff]
    %v56 = vld [vmem:[%s2 + $0x78] sm:$0xff]
    %v57 = vld [vmem:[%s2 + $0x80] sm:$0xff]
    %v58 = vld [vmem:[%s2 + $0x90] sm:$0x1]
    %59 = vmatpush.msra.mxu0 %v56
    %60 = vmatpush.msra.mxu0 %v55
    %61 = vmatpush.msra.mxu0 %v54
    %62 = vmatpush.msra.mxu0 %v53
    %63 = vmatpush.msra.mxu0 %v52
    %64 = vmatpush.msra.mxu0 %v51
    %65 = vmatpush.msra.mxu0 %v50
    %66 = vmatpush.msra.mxu0 %v49
    %67 = vmatpush.msra.mxu0 %v48
    %68 = vmatpush.msra.mxu0 %v47
    %69 = vmatpush.msra.mxu0 %v46
    %70 = vmatpush.msra.mxu0 %v45
    %71 = vmatpush.msra.mxu0 %v44
    %72 = vmatpush.msra.mxu0 %v43
    %73 = vmatpush.msra.mxu0 %v42
    %74 = vmatpush.msra.mxu0 %v41
    %75 = vmatmul.f32.gmra.mxu0 %v39
    %v76 = vpop.f32.mrf.mxu0
    %v77 = vadd.f32 %v57, %v76
    %78 = vmatmul.f32.gmra.mxu0 %v40
    %v79 = vpop.f32.mrf.mxu0
    %v80 = vadd.f32 %v57, %v79
    %81 = vdwg.mxu0
    %v82 = vperm.slane %v58, 0
    %v83 = vadd.f32 %v77, %v82
    %v84 = vadd.f32 %v80, %v82
    %v85 = vld [vmem:[%s5] sm:$0xff]
    %v86 = vld [vmem:[%s5 + $0x8] sm:$0xff]
    %v87 = vld [vmem:[%s5 + $0x10] sm:$0xff]
    %v88 = vld [vmem:[%s5 + $0x18] sm:$0xff]
    %v89 = vld [vmem:[%s5 + $0x20] sm:$0xff]
    %vm90 = vcmask 261120
    %v91 = vsel %vm90, %v83, 0.0
    %92 = vadd.xlane.f32.xlu0 %v91
    %v93 = vpop.xlane.xlu0 %92
    %v94 = vsel %vm90, %v84, 0.0
    %95 = vadd.xlane.f32.xlu0 %v94
    %v96 = vpop.xlane.xlu0 %95
    %v97 = vrcp.pop 32.0
    %v98 = vmul.f32 32.0, %v97
    %v99 = vsub.f32 1.0, %v98
    %v100 = vmul.f32 %v97, %v99
    %v101 = vadd.f32 %v97, %v100
    %vm102 = vweird.f32 %v97
    %v103 = vsel %vm102, %v97, %v101
    %v104 = vmul.f32 %v93, %v103
    %v105 = vmul.f32 %v96, %v103
    %v106 = vsub.f32 %v83, %v104
    %v107 = vsub.f32 %v84, %v105
    %v108 = vmul.f32 %v106, %v106
    %v109 = vmul.f32 %v107, %v107
    %v110 = vsel %vm90, %v108, 0.0
    %111 = vadd.xlane.f32.xlu0 %v110
    %v112 = vpop.xlane.xlu0 %111
    %v113 = vsel %vm90, %v109, 0.0
    %114 = vadd.xlane.f32.xlu0 %v113
    %v115 = vpop.xlane.xlu0 %114
    %v116 = vmul.f32 %v112, %v103
    %v117 = vmul.f32 %v115, %v103
    %v118 = vadd.f32 %v116, 1e-12
    %v119 = vadd.f32 %v117, 1e-12
    %v120 = vrsqrt.pop %v118
    %v121 = vmul.f32 %v120, %v118
    %v122 = vmul.f32 %v121, %v120
    %v123 = vmul.f32 0.5, %v122
    %v124 = vsub.f32 1.5, %v123
    %v125 = vmul.f32 %v120, %v124
    %vm126 = vweird.f32 %v118
    %vm127 = vweird.f32 %v120
    %vm128 = vmor %vm126, %vm127
    %v129 = vsel %vm128, %v120, %v125
    %v130 = vrsqrt.pop %v119
    %v131 = vmul.f32 %v130, %v119
    %v132 = vmul.f32 %v131, %v130
    %v133 = vmul.f32 0.5, %v132
    %v134 = vsub.f32 1.5, %v133
    %v135 = vmul.f32 %v130, %v134
    %vm136 = vweird.f32 %v119
    %vm137 = vweird.f32 %v130
    %vm138 = vmor %vm136, %vm137
    %v139 = vsel %vm138, %v130, %v135
    %v140 = vmul.f32 %v106, %v129
    %v141 = vmul.f32 %v107, %v139
    %v142 = vperm.slane %v89, 0
    %v143 = vmul.f32 %v140, %v142
    %v144 = vmul.f32 %v141, %v142
    %146 = vrot.lane.b32.xlu0 %v142, 96
    %v147 = vpop.permute.xlu0 %146
    %v149 = vadd.f32 %v143, %v147
    %v150 = vadd.f32 %v144, %v147
    %v151 = vld [vmem:[%s1] sm:$0x3]
    %v152 = vsub.f32 1.0, %v151
    %v153 = vmul.f32 %v152, -1e+09
    %v154 = vld [vmem:[%s3] sm:$0xff]
    %v155 = vld [vmem:[%s3 + $0x8] sm:$0xf]
    %v156 = vld [vmem:[%s3 + $0xc] sm:$0xff]
    %v157 = vld [vmem:[%s3 + $0x14] sm:$0xf]
    %v158 = vld [vmem:[%s3 + $0x18] sm:$0xff]
    %v159 = vld [vmem:[%s3 + $0x20] sm:$0xf]
    %v160 = vld [vmem:[%s3 + $0x24] sm:$0xff]
    %v161 = vld [vmem:[%s3 + $0x2c] sm:$0xf]
    %v162 = vld [vmem:[%s4] sm:$0x1]
    %s163 = scalar_lea.vmem %s4, 1
    %v164 = vld [vmem:[%s163] sm:$0x1]
    %s165 = scalar_lea.vmem %s4, 2
    %v166 = vld [vmem:[%s165] sm:$0x1]
    %s167 = scalar_lea.vmem %s4, 3
    %v168 = vld [vmem:[%s167] sm:$0x1]
    %s169 = scalar_lea.vmem %s4, 4
    %v170 = vld [vmem:[%s169] sm:$0x1]
    %s171 = scalar_lea.vmem %s4, 5
    %v172 = vld [vmem:[%s171] sm:$0x1]
    %s173 = scalar_lea.vmem %s4, 6
    %v174 = vld [vmem:[%s173] sm:$0x1]
    %s175 = scalar_lea.vmem %s4, 7
    %v176 = vld [vmem:[%s175] sm:$0x1]
    %v177 = vpack.c.bf16 %v150, %v149
    %v179 = vperm.slane %v162, 0
    %v185 = vunpack.c.l.b16 %v154
    %v186 = vunpack.c.l.b16 %v156
    %v187 = vunpack.c.l.b16 %v158
    %v188 = vunpack.c.l.b16 %v160
    %v189 = vpack.c.b16 %v186, %v185
    %v190 = vpack.c.b16 %v188, %v187
    %v194 = vsel %vm90, %v177, 0
    %196 = vmatpush.bf16.msra.mxu0 0
    %197 = vmatpush.bf16.msra.mxu0 0
    %198 = vmatpush.bf16.msra.mxu0 0
    %199 = vmatpush.bf16.msra.mxu0 0
    %200 = vmatpush.bf16.msra.mxu0 0
    %201 = vmatpush.bf16.msra.mxu0 0
    %202 = vmatpush.bf16.msra.mxu0 %v190
    %203 = vmatpush.bf16.msra.mxu0 %v189
    %204 = vmatmul.bf16.gmra.mxu0 %v194
    %v205 = vpop.f32.mrf.mxu0
    %v206 = vadd.f32 %v179, %v205
    %v207 = vpop.f32.mrf.mxu0
    %v208 = vadd.f32 %v179, %v207
    %209 = vdwg.mxu0
    %v210 = vpack.c.bf16 %v206, %v206
    %v211 = vpack.c.bf16 %v208, %v208
    %v213 = vunpack.c.l.b16 %v210
    %v214 = vpack.c.b16 %v213, %v213
    %215 = vrot.lane.b32.xlu0 %v214, 96
    %v216 = vpop.permute.xlu0 %215
    %vm217 = vcmask 64512
    %v219 = vsel %vm217, %v210, 0
    %v222 = vsel %vm217, %v216, 0
    %224 = vmatpush.bf16.xpose.msra.mxu0 0
    %225 = vmatpush.bf16.xpose.msra.mxu0 0
    %226 = vmatpush.bf16.xpose.msra.mxu0 0
    %227 = vmatpush.bf16.xpose.msra.mxu0 0
    %228 = vmatpush.bf16.xpose.msra.mxu0 0
    %229 = vmatpush.bf16.xpose.msra.mxu0 0
    %230 = vmatpush.bf16.xpose.msra.mxu0 0
    %231 = vmatpush.bf16.xpose.msra.mxu0 %v222
    %232 = vmatmul.bf16.gmra.mxu0 %v219
    %v233 = vpop.f32.mrf.mxu0
    %v234 = vadd.f32 0.0, %v233
    %v235 = vpop.f32.mrf.mxu0
    %236 = vdwg.mxu0
    %v237 = vmul.f32 %v234, 0.35355338
    %v238 = vperm.slane %v153, 0
    %v239 = vadd.f32 %v237, %v238
    %v240 = vsel %vm217, %v239, -inf
    %241 = vmax.xlane.f32.xlu0 %v240
    %v242 = vpop.xlane.xlu0 %241
    %v243 = vsub.f32 %v239, %v242
    %v244 = vmul.f32 %v243, 1.442695
    %v245 = vpow.pop %v244
    %v246 = vsel %vm217, %v245, 0.0
    %247 = vadd.xlane.f32.xlu0 %v246
    %v248 = vpop.xlane.xlu0 %247
    %v249 = vrcp.pop %v248
    %v250 = vmul.f32 %v245, %v249
    %v251 = vpack.c.bf16 %v250, %v250
    %252 = vrot.lane.b32.xlu0 %v214, 64
    %v253 = vpop.permute.xlu0 %252
    %v255 = vsel %vm217, %v251, 0
    %vm257 = vcmask 1043456
    %v259 = vsel %vm257, %v253, 0
    %261 = vmatpush.bf16.msra.mxu0 0
    %262 = vmatpush.bf16.msra.mxu0 0
    %263 = vmatpush.bf16.msra.mxu0 0
    %264 = vmatpush.bf16.msra.mxu0 0
    %265 = vmatpush.bf16.msra.mxu0 0
    %266 = vmatpush.bf16.msra.mxu0 0
    %267 = vmatpush.bf16.msra.mxu0 0
    %268 = vmatpush.bf16.msra.mxu0 %v259
    %269 = vmatmul.bf16.gmra.mxu0 %v255
    %v270 = vpop.f32.mrf.mxu0
    %v271 = vadd.f32 0.0, %v270
    %v272 = vpop.f32.mrf.mxu0
    %273 = vdwg.mxu0
    %274 = vrot.lane.b32.xlu0 %v214, 120
    %v275 = vpop.permute.xlu0 %274
    %276 = vrot.lane.b32.xlu0 %v214, 88
    %v277 = vpop.permute.xlu0 %276
    %v279 = vsel %vm217, %v275, 0
    %v282 = vsel %vm217, %v277, 0
    %284 = vmatpush.bf16.xpose.msra.mxu0 0
    %285 = vmatpush.bf16.xpose.msra.mxu0 0
    %286 = vmatpush.bf16.xpose.msra.mxu0 0
    %287 = vmatpush.bf16.xpose.msra.mxu0 0
    %288 = vmatpush.bf16.xpose.msra.mxu0 0
    %289 = vmatpush.bf16.xpose.msra.mxu0 0
    %290 = vmatpush.bf16.xpose.msra.mxu0 0
    %291 = vmatpush.bf16.xpose.msra.mxu0 %v282
    %292 = vmatmul.bf16.gmra.mxu0 %v279
    %v293 = vpop.f32.mrf.mxu0
    %v294 = vadd.f32 0.0, %v293
    %v295 = vpop.f32.mrf.mxu0
    %296 = vdwg.mxu0
    %v297 = vmul.f32 %v294, 0.35355338
    %v298 = vadd.f32 %v297, %v238
    %v299 = vsel %vm217, %v298, -inf
    %300 = vmax.xlane.f32.xlu0 %v299
    %v301 = vpop.xlane.xlu0 %300
    %v302 = vsub.f32 %v298, %v301
    %v303 = vmul.f32 %v302, 1.442695
    %v304 = vpow.pop %v303
    %v305 = vsel %vm217, %v304, 0.0
    %306 = vadd.xlane.f32.xlu0 %v305
    %v307 = vpop.xlane.xlu0 %306
    %v308 = vrcp.pop %v307
    %v309 = vmul.f32 %v304, %v308
    %v310 = vpack.c.bf16 %v309, %v309
    %311 = vrot.lane.b32.xlu0 %v214, 56
    %v312 = vpop.permute.xlu0 %311
    %v314 = vsel %vm217, %v310, 0
    %v317 = vsel %vm257, %v312, 0
    %319 = vmatpush.bf16.msra.mxu0 0
    %320 = vmatpush.bf16.msra.mxu0 0
    %321 = vmatpush.bf16.msra.mxu0 0
    %322 = vmatpush.bf16.msra.mxu0 0
    %323 = vmatpush.bf16.msra.mxu0 0
    %324 = vmatpush.bf16.msra.mxu0 0
    %325 = vmatpush.bf16.msra.mxu0 0
    %326 = vmatpush.bf16.msra.mxu0 %v317
    %327 = vmatmul.bf16.gmra.mxu0 %v314
    %v328 = vpop.f32.mrf.mxu0
    %v329 = vadd.f32 0.0, %v328
    %v330 = vpop.f32.mrf.mxu0
    %331 = vdwg.mxu0
    %332 = vrot.lane.b32.xlu0 %v214, 112
    %v333 = vpop.permute.xlu0 %332
    %334 = vrot.lane.b32.xlu0 %v214, 80
    %v335 = vpop.permute.xlu0 %334
    %v337 = vsel %vm217, %v333, 0
    %v340 = vsel %vm217, %v335, 0
    %342 = vmatpush.bf16.xpose.msra.mxu0 0
    %343 = vmatpush.bf16.xpose.msra.mxu0 0
    %344 = vmatpush.bf16.xpose.msra.mxu0 0
    %345 = vmatpush.bf16.xpose.msra.mxu0 0
    %346 = vmatpush.bf16.xpose.msra.mxu0 0
    %347 = vmatpush.bf16.xpose.msra.mxu0 0
    %348 = vmatpush.bf16.xpose.msra.mxu0 0
    %349 = vmatpush.bf16.xpose.msra.mxu0 %v340
    %350 = vmatmul.bf16.gmra.mxu0 %v337
    %v351 = vpop.f32.mrf.mxu0
    %v352 = vadd.f32 0.0, %v351
    %v353 = vpop.f32.mrf.mxu0
    %354 = vdwg.mxu0
    %v355 = vmul.f32 %v352, 0.35355338
    %v356 = vadd.f32 %v355, %v238
    %v357 = vsel %vm217, %v356, -inf
    %358 = vmax.xlane.f32.xlu0 %v357
    %v359 = vpop.xlane.xlu0 %358
    %v360 = vsub.f32 %v356, %v359
    %v361 = vmul.f32 %v360, 1.442695
    %v362 = vpow.pop %v361
    %v363 = vsel %vm217, %v362, 0.0
    %364 = vadd.xlane.f32.xlu0 %v363
    %v365 = vpop.xlane.xlu0 %364
    %v366 = vrcp.pop %v365
    %v367 = vmul.f32 %v362, %v366
    %v368 = vpack.c.bf16 %v367, %v367
    %369 = vrot.lane.b32.xlu0 %v214, 48
    %v370 = vpop.permute.xlu0 %369
    %v372 = vsel %vm217, %v368, 0
    %v375 = vsel %vm257, %v370, 0
    %377 = vmatpush.bf16.msra.mxu0 0
    %378 = vmatpush.bf16.msra.mxu0 0
    %379 = vmatpush.bf16.msra.mxu0 0
    %380 = vmatpush.bf16.msra.mxu0 0
    %381 = vmatpush.bf16.msra.mxu0 0
    %382 = vmatpush.bf16.msra.mxu0 0
    %383 = vmatpush.bf16.msra.mxu0 0
    %384 = vmatpush.bf16.msra.mxu0 %v375
    %385 = vmatmul.bf16.gmra.mxu0 %v372
    %v386 = vpop.f32.mrf.mxu0
    %v387 = vadd.f32 0.0, %v386
    %v388 = vpop.f32.mrf.mxu0
    %389 = vdwg.mxu0
    %390 = vrot.lane.b32.xlu0 %v214, 104
    %v391 = vpop.permute.xlu0 %390
    %392 = vrot.lane.b32.xlu0 %v214, 72
    %v393 = vpop.permute.xlu0 %392
    %v395 = vsel %vm217, %v391, 0
    %v398 = vsel %vm217, %v393, 0
    %400 = vmatpush.bf16.xpose.msra.mxu0 0
    %401 = vmatpush.bf16.xpose.msra.mxu0 0
    %402 = vmatpush.bf16.xpose.msra.mxu0 0
    %403 = vmatpush.bf16.xpose.msra.mxu0 0
    %404 = vmatpush.bf16.xpose.msra.mxu0 0
    %405 = vmatpush.bf16.xpose.msra.mxu0 0
    %406 = vmatpush.bf16.xpose.msra.mxu0 0
    %407 = vmatpush.bf16.xpose.msra.mxu0 %v398
    %408 = vmatmul.bf16.gmra.mxu0 %v395
    %v409 = vpop.f32.mrf.mxu0
    %v410 = vadd.f32 0.0, %v409
    %v411 = vpop.f32.mrf.mxu0
    %412 = vdwg.mxu0
    %v413 = vmul.f32 %v410, 0.35355338
    %v414 = vadd.f32 %v413, %v238
    %v415 = vsel %vm217, %v414, -inf
    %416 = vmax.xlane.f32.xlu0 %v415
    %v417 = vpop.xlane.xlu0 %416
    %v418 = vsub.f32 %v414, %v417
    %v419 = vmul.f32 %v418, 1.442695
    %v420 = vpow.pop %v419
    %v421 = vsel %vm217, %v420, 0.0
    %422 = vadd.xlane.f32.xlu0 %v421
    %v423 = vpop.xlane.xlu0 %422
    %v424 = vrcp.pop %v423
    %v425 = vmul.f32 %v420, %v424
    %v426 = vpack.c.bf16 %v425, %v425
    %427 = vrot.lane.b32.xlu0 %v214, 40
    %v428 = vpop.permute.xlu0 %427
    %v430 = vsel %vm217, %v426, 0
    %v433 = vsel %vm257, %v428, 0
    %435 = vmatpush.bf16.msra.mxu0 0
    %436 = vmatpush.bf16.msra.mxu0 0
    %437 = vmatpush.bf16.msra.mxu0 0
    %438 = vmatpush.bf16.msra.mxu0 0
    %439 = vmatpush.bf16.msra.mxu0 0
    %440 = vmatpush.bf16.msra.mxu0 0
    %441 = vmatpush.bf16.msra.mxu0 0
    %442 = vmatpush.bf16.msra.mxu0 %v433
    %443 = vmatmul.bf16.gmra.mxu0 %v430
    %v444 = vpop.f32.mrf.mxu0
    %v445 = vadd.f32 0.0, %v444
    %v446 = vpop.f32.mrf.mxu0
    %447 = vdwg.mxu0
    %449 = vrot.lane.b32.xlu0 %v329, 8
    %v450 = vpop.permute.xlu0 %449
    %453 = vrot.lane.b32.xlu0 %v387, 16
    %v454 = vpop.permute.xlu0 %453
    %457 = vrot.lane.b32.xlu0 %v445, 24
    %v458 = vpop.permute.xlu0 %457
    %v460 = vsel %vm217, %v271, %v450
    %vm461 = vcmask 130048
    %v462 = vsel %vm461, %v460, %v454
    %vm463 = vcmask 195584
    %v464 = vsel %vm463, %v462, %v458
    %v466 = vunpack.c.l.b16 %v211
    %v467 = vpack.c.b16 %v466, %v466
    %468 = vrot.lane.b32.xlu0 %v467, 96
    %v469 = vpop.permute.xlu0 %468
    %v471 = vsel %vm217, %v211, 0
    %v474 = vsel %vm217, %v469, 0
    %476 = vmatpush.bf16.xpose.msra.mxu0 0
    %477 = vmatpush.bf16.xpose.msra.mxu0 0
    %478 = vmatpush.bf16.xpose.msra.mxu0 0
    %479 = vmatpush.bf16.xpose.msra.mxu0 0
    %480 = vmatpush.bf16.xpose.msra.mxu0 0
    %481 = vmatpush.bf16.xpose.msra.mxu0 0
    %482 = vmatpush.bf16.xpose.msra.mxu0 0
    %483 = vmatpush.bf16.xpose.msra.mxu0 %v474
    %484 = vmatmul.bf16.gmra.mxu0 %v471
    %v485 = vpop.f32.mrf.mxu0
    %v486 = vadd.f32 0.0, %v485
    %v487 = vpop.f32.mrf.mxu0
    %488 = vdwg.mxu0
    %v489 = vmul.f32 %v486, 0.35355338
    %v490 = vperm.slane %v153, 1
    %v491 = vadd.f32 %v489, %v490
    %v492 = vsel %vm217, %v491, -inf
    %493 = vmax.xlane.f32.xlu0 %v492
    %v494 = vpop.xlane.xlu0 %493
    %v495 = vsub.f32 %v491, %v494
    %v496 = vmul.f32 %v495, 1.442695
    %v497 = vpow.pop %v496
    %v498 = vsel %vm217, %v497, 0.0
    %499 = vadd.xlane.f32.xlu0 %v498
    %v500 = vpop.xlane.xlu0 %499
    %v501 = vrcp.pop %v500
    %v502 = vmul.f32 %v497, %v501
    %v503 = vpack.c.bf16 %v502, %v502
    %504 = vrot.lane.b32.xlu0 %v467, 64
    %v505 = vpop.permute.xlu0 %504
    %v507 = vsel %vm217, %v503, 0
    %v510 = vsel %vm257, %v505, 0
    %512 = vmatpush.bf16.msra.mxu0 0
    %513 = vmatpush.bf16.msra.mxu0 0
    %514 = vmatpush.bf16.msra.mxu0 0
    %515 = vmatpush.bf16.msra.mxu0 0
    %516 = vmatpush.bf16.msra.mxu0 0
    %517 = vmatpush.bf16.msra.mxu0 0
    %518 = vmatpush.bf16.msra.mxu0 0
    %519 = vmatpush.bf16.msra.mxu0 %v510
    %520 = vmatmul.bf16.gmra.mxu0 %v507
    %v521 = vpop.f32.mrf.mxu0
    %v522 = vadd.f32 0.0, %v521
    %v523 = vpop.f32.mrf.mxu0
    %524 = vdwg.mxu0
    %525 = vrot.lane.b32.xlu0 %v467, 120
    %v526 = vpop.permute.xlu0 %525
    %527 = vrot.lane.b32.xlu0 %v467, 88
    %v528 = vpop.permute.xlu0 %527
    %v530 = vsel %vm217, %v526, 0
    %v533 = vsel %vm217, %v528, 0
    %535 = vmatpush.bf16.xpose.msra.mxu0 0
    %536 = vmatpush.bf16.xpose.msra.mxu0 0
    %537 = vmatpush.bf16.xpose.msra.mxu0 0
    %538 = vmatpush.bf16.xpose.msra.mxu0 0
    %539 = vmatpush.bf16.xpose.msra.mxu0 0
    %540 = vmatpush.bf16.xpose.msra.mxu0 0
    %541 = vmatpush.bf16.xpose.msra.mxu0 0
    %542 = vmatpush.bf16.xpose.msra.mxu0 %v533
    %543 = vmatmul.bf16.gmra.mxu0 %v530
    %v544 = vpop.f32.mrf.mxu0
    %v545 = vadd.f32 0.0, %v544
    %v546 = vpop.f32.mrf.mxu0
    %547 = vdwg.mxu0
    %v548 = vmul.f32 %v545, 0.35355338
    %v549 = vadd.f32 %v548, %v490
    %v550 = vsel %vm217, %v549, -inf
    %551 = vmax.xlane.f32.xlu0 %v550
    %v552 = vpop.xlane.xlu0 %551
    %v553 = vsub.f32 %v549, %v552
    %v554 = vmul.f32 %v553, 1.442695
    %v555 = vpow.pop %v554
    %v556 = vsel %vm217, %v555, 0.0
    %557 = vadd.xlane.f32.xlu0 %v556
    %v558 = vpop.xlane.xlu0 %557
    %v559 = vrcp.pop %v558
    %v560 = vmul.f32 %v555, %v559
    %v561 = vpack.c.bf16 %v560, %v560
    %562 = vrot.lane.b32.xlu0 %v467, 56
    %v563 = vpop.permute.xlu0 %562
    %v565 = vsel %vm217, %v561, 0
    %v568 = vsel %vm257, %v563, 0
    %570 = vmatpush.bf16.msra.mxu0 0
    %571 = vmatpush.bf16.msra.mxu0 0
    %572 = vmatpush.bf16.msra.mxu0 0
    %573 = vmatpush.bf16.msra.mxu0 0
    %574 = vmatpush.bf16.msra.mxu0 0
    %575 = vmatpush.bf16.msra.mxu0 0
    %576 = vmatpush.bf16.msra.mxu0 0
    %577 = vmatpush.bf16.msra.mxu0 %v568
    %578 = vmatmul.bf16.gmra.mxu0 %v565
    %v579 = vpop.f32.mrf.mxu0
    %v580 = vadd.f32 0.0, %v579
    %v581 = vpop.f32.mrf.mxu0
    %582 = vdwg.mxu0
    %583 = vrot.lane.b32.xlu0 %v467, 112
    %v584 = vpop.permute.xlu0 %583
    %585 = vrot.lane.b32.xlu0 %v467, 80
    %v586 = vpop.permute.xlu0 %585
    %v588 = vsel %vm217, %v584, 0
    %v591 = vsel %vm217, %v586, 0
    %593 = vmatpush.bf16.xpose.msra.mxu0 0
    %594 = vmatpush.bf16.xpose.msra.mxu0 0
    %595 = vmatpush.bf16.xpose.msra.mxu0 0
    %596 = vmatpush.bf16.xpose.msra.mxu0 0
    %597 = vmatpush.bf16.xpose.msra.mxu0 0
    %598 = vmatpush.bf16.xpose.msra.mxu0 0
    %599 = vmatpush.bf16.xpose.msra.mxu0 0
    %600 = vmatpush.bf16.xpose.msra.mxu0 %v591
    %601 = vmatmul.bf16.gmra.mxu0 %v588
    %v602 = vpop.f32.mrf.mxu0
    %v603 = vadd.f32 0.0, %v602
    %v604 = vpop.f32.mrf.mxu0
    %605 = vdwg.mxu0
    %v606 = vmul.f32 %v603, 0.35355338
    %v607 = vadd.f32 %v606, %v490
    %v608 = vsel %vm217, %v607, -inf
    %609 = vmax.xlane.f32.xlu0 %v608
    %v610 = vpop.xlane.xlu0 %609
    %v611 = vsub.f32 %v607, %v610
    %v612 = vmul.f32 %v611, 1.442695
    %v613 = vpow.pop %v612
    %v614 = vsel %vm217, %v613, 0.0
    %615 = vadd.xlane.f32.xlu0 %v614
    %v616 = vpop.xlane.xlu0 %615
    %v617 = vrcp.pop %v616
    %v618 = vmul.f32 %v613, %v617
    %v619 = vpack.c.bf16 %v618, %v618
    %620 = vrot.lane.b32.xlu0 %v467, 48
    %v621 = vpop.permute.xlu0 %620
    %v623 = vsel %vm217, %v619, 0
    %v626 = vsel %vm257, %v621, 0
    %628 = vmatpush.bf16.msra.mxu0 0
    %629 = vmatpush.bf16.msra.mxu0 0
    %630 = vmatpush.bf16.msra.mxu0 0
    %631 = vmatpush.bf16.msra.mxu0 0
    %632 = vmatpush.bf16.msra.mxu0 0
    %633 = vmatpush.bf16.msra.mxu0 0
    %634 = vmatpush.bf16.msra.mxu0 0
    %635 = vmatpush.bf16.msra.mxu0 %v626
    %636 = vmatmul.bf16.gmra.mxu0 %v623
    %v637 = vpop.f32.mrf.mxu0
    %v638 = vadd.f32 0.0, %v637
    %v639 = vpop.f32.mrf.mxu0
    %640 = vdwg.mxu0
    %641 = vrot.lane.b32.xlu0 %v467, 104
    %v642 = vpop.permute.xlu0 %641
    %643 = vrot.lane.b32.xlu0 %v467, 72
    %v644 = vpop.permute.xlu0 %643
    %v646 = vsel %vm217, %v642, 0
    %v649 = vsel %vm217, %v644, 0
    %651 = vmatpush.bf16.xpose.msra.mxu0 0
    %652 = vmatpush.bf16.xpose.msra.mxu0 0
    %653 = vmatpush.bf16.xpose.msra.mxu0 0
    %654 = vmatpush.bf16.xpose.msra.mxu0 0
    %655 = vmatpush.bf16.xpose.msra.mxu0 0
    %656 = vmatpush.bf16.xpose.msra.mxu0 0
    %657 = vmatpush.bf16.xpose.msra.mxu0 0
    %658 = vmatpush.bf16.xpose.msra.mxu0 %v649
    %659 = vmatmul.bf16.gmra.mxu0 %v646
    %v660 = vpop.f32.mrf.mxu0
    %v661 = vadd.f32 0.0, %v660
    %v662 = vpop.f32.mrf.mxu0
    %663 = vdwg.mxu0
    %v664 = vmul.f32 %v661, 0.35355338
    %v665 = vadd.f32 %v664, %v490
    %v666 = vsel %vm217, %v665, -inf
    %667 = vmax.xlane.f32.xlu0 %v666
    %v668 = vpop.xlane.xlu0 %667
    %v669 = vsub.f32 %v665, %v668
    %v670 = vmul.f32 %v669, 1.442695
    %v671 = vpow.pop %v670
    %v672 = vsel %vm217, %v671, 0.0
    %673 = vadd.xlane.f32.xlu0 %v672
    %v674 = vpop.xlane.xlu0 %673
    %v675 = vrcp.pop %v674
    %v676 = vmul.f32 %v671, %v675
    %v677 = vpack.c.bf16 %v676, %v676
    %678 = vrot.lane.b32.xlu0 %v467, 40
    %v679 = vpop.permute.xlu0 %678
    %v681 = vsel %vm217, %v677, 0
    %v684 = vsel %vm257, %v679, 0
    %686 = vmatpush.bf16.msra.mxu0 0
    %687 = vmatpush.bf16.msra.mxu0 0
    %688 = vmatpush.bf16.msra.mxu0 0
    %689 = vmatpush.bf16.msra.mxu0 0
    %690 = vmatpush.bf16.msra.mxu0 0
    %691 = vmatpush.bf16.msra.mxu0 0
    %692 = vmatpush.bf16.msra.mxu0 0
    %693 = vmatpush.bf16.msra.mxu0 %v684
    %694 = vmatmul.bf16.gmra.mxu0 %v681
    %v695 = vpop.f32.mrf.mxu0
    %v696 = vadd.f32 0.0, %v695
    %v697 = vpop.f32.mrf.mxu0
    %698 = vdwg.mxu0
    %700 = vrot.lane.b32.xlu0 %v580, 8
    %v701 = vpop.permute.xlu0 %700
    %704 = vrot.lane.b32.xlu0 %v638, 16
    %v705 = vpop.permute.xlu0 %704
    %708 = vrot.lane.b32.xlu0 %v696, 24
    %v709 = vpop.permute.xlu0 %708
    %v711 = vsel %vm217, %v522, %v701
    %v712 = vsel %vm461, %v711, %v705
    %v713 = vsel %vm463, %v712, %v709
    %v714 = vpack.c.bf16 %v713, %v464
    %v716 = vperm.slane %v164, 0
    %718 = vrot.lane.b32.xlu0 %v189, 32
    %v719 = vpop.permute.xlu0 %718
    %720 = vrot.lane.b32.xlu0 %v190, 32
    %v721 = vpop.permute.xlu0 %720
    %v725 = vsel %vm90, %v714, 0
    %727 = vmatpush.bf16.msra.mxu0 0
    %728 = vmatpush.bf16.msra.mxu0 0
    %729 = vmatpush.bf16.msra.mxu0 0
    %730 = vmatpush.bf16.msra.mxu0 0
    %731 = vmatpush.bf16.msra.mxu0 0
    %732 = vmatpush.bf16.msra.mxu0 0
    %733 = vmatpush.bf16.msra.mxu0 %v721
    %734 = vmatpush.bf16.msra.mxu0 %v719
    %735 = vmatmul.bf16.gmra.mxu0 %v725
    %v736 = vpop.f32.mrf.mxu0
    %v737 = vadd.f32 %v716, %v736
    %v738 = vpop.f32.mrf.mxu0
    %v739 = vadd.f32 %v716, %v738
    %740 = vdwg.mxu0
    %v741 = vadd.f32 %v737, %v149
    %v742 = vadd.f32 %v739, %v150
    %v743 = vsel %vm90, %v741, 0.0
    %744 = vadd.xlane.f32.xlu0 %v743
    %v745 = vpop.xlane.xlu0 %744
    %v746 = vsel %vm90, %v742, 0.0
    %747 = vadd.xlane.f32.xlu0 %v746
    %v748 = vpop.xlane.xlu0 %747
    %v749 = vmul.f32 %v745, %v103
    %v750 = vmul.f32 %v748, %v103
    %v751 = vsub.f32 %v741, %v749
    %v752 = vsub.f32 %v742, %v750
    %v753 = vmul.f32 %v751, %v751
    %v754 = vmul.f32 %v752, %v752
    %v755 = vsel %vm90, %v753, 0.0
    %756 = vadd.xlane.f32.xlu0 %v755
    %v757 = vpop.xlane.xlu0 %756
    %v758 = vsel %vm90, %v754, 0.0
    %759 = vadd.xlane.f32.xlu0 %v758
    %v760 = vpop.xlane.xlu0 %759
    %v761 = vmul.f32 %v757, %v103
    %v762 = vmul.f32 %v760, %v103
    %v763 = vadd.f32 %v761, 1e-12
    %v764 = vadd.f32 %v762, 1e-12
    %v765 = vrsqrt.pop %v763
    %v766 = vmul.f32 %v765, %v763
    %v767 = vmul.f32 %v766, %v765
    %v768 = vmul.f32 0.5, %v767
    %v769 = vsub.f32 1.5, %v768
    %v770 = vmul.f32 %v765, %v769
    %vm771 = vweird.f32 %v763
    %vm772 = vweird.f32 %v765
    %vm773 = vmor %vm771, %vm772
    %v774 = vsel %vm773, %v765, %v770
    %v775 = vrsqrt.pop %v764
    %v776 = vmul.f32 %v775, %v764
    %v777 = vmul.f32 %v776, %v775
    %v778 = vmul.f32 0.5, %v777
    %v779 = vsub.f32 1.5, %v778
    %v780 = vmul.f32 %v775, %v779
    %vm781 = vweird.f32 %v764
    %vm782 = vweird.f32 %v775
    %vm783 = vmor %vm781, %vm782
    %v784 = vsel %vm783, %v775, %v780
    %v785 = vmul.f32 %v751, %v774
    %v786 = vmul.f32 %v752, %v784
    %v788 = vperm.slane %v166, 0
    %v790 = vmul.f32 %v785, %v788
    %v791 = vmul.f32 %v786, %v788
    %v793 = vperm.slane %v168, 0
    %v795 = vadd.f32 %v790, %v793
    %v796 = vadd.f32 %v791, %v793
    %v797 = vpack.c.bf16 %v796, %v795
    %v799 = vperm.slane %v170, 0
    %v801 = vunpack.c.h.b16 %v154
    %v802 = vunpack.c.h.b16 %v156
    %v803 = vunpack.c.h.b16 %v158
    %v804 = vunpack.c.h.b16 %v160
    %v805 = vpack.c.b16 %v802, %v801
    %v806 = vpack.c.b16 %v804, %v803
    %v810 = vsel %vm90, %v797, 0
    %812 = vmatpush.bf16.msra.mxu0 0
    %813 = vmatpush.bf16.msra.mxu0 0
    %814 = vmatpush.bf16.msra.mxu0 0
    %815 = vmatpush.bf16.msra.mxu0 0
    %816 = vmatpush.bf16.msra.mxu0 0
    %817 = vmatpush.bf16.msra.mxu0 0
    %818 = vmatpush.bf16.msra.mxu0 %v806
    %819 = vmatpush.bf16.msra.mxu0 %v805
    %820 = vmatmul.bf16.gmra.mxu0 %v810
    %v821 = vpop.f32.mrf.mxu0
    %v822 = vadd.f32 %v799, %v821
    %v823 = vpop.f32.mrf.mxu0
    %v824 = vadd.f32 %v799, %v823
    %825 = vdwg.mxu0
    %v826 = vmul.f32 %v822, %v822
    %v827 = vmul.f32 %v824, %v824
    %v828 = vmul.f32 %v822, %v826
    %v829 = vmul.f32 %v824, %v827
    %v830 = vmul.f32 %v828, 0.044715
    %v831 = vmul.f32 %v829, 0.044715
    %v832 = vadd.f32 %v822, %v830
    %v833 = vadd.f32 %v824, %v831
    %v834 = vmul.f32 %v832, 0.7978846
    %v835 = vmul.f32 %v833, 0.7978846
    %v836 = vtanh.pop %v834
    %v837 = vtanh.pop %v835
    %v838 = vadd.f32 %v836, 1.0
    %v839 = vadd.f32 %v837, 1.0
    %v840 = vmul.f32 %v838, 0.5
    %v841 = vmul.f32 %v839, 0.5
    %v842 = vmul.f32 %v822, %v840
    %v843 = vmul.f32 %v824, %v841
    %v844 = vpack.c.bf16 %v843, %v842
    %v846 = vperm.slane %v172, 0
    %v852 = vunpack.c.l.b16 %v155
    %v853 = vunpack.c.l.b16 %v157
    %v854 = vunpack.c.l.b16 %v159
    %v855 = vunpack.c.l.b16 %v161
    %v856 = vpack.c.b16 %v853, %v852
    %v857 = vpack.c.b16 %v855, %v854
    %860 = vmatpush.bf16.xpose.msra.mxu0 0
    %861 = vmatpush.bf16.xpose.msra.mxu0 0
    %862 = vmatpush.bf16.xpose.msra.mxu0 0
    %863 = vmatpush.bf16.xpose.msra.mxu0 0
    %864 = vmatpush.bf16.xpose.msra.mxu0 0
    %865 = vmatpush.bf16.xpose.msra.mxu0 0
    %866 = vmatpush.bf16.xpose.msra.mxu0 %v857
    %867 = vmatpush.bf16.xpose.msra.mxu0 %v856
    %868 = vmatmul.bf16.gmra.mxu0 %v844
    %v869 = vpop.f32.mrf.mxu0
    %v870 = vadd.f32 %v846, %v869
    %v871 = vpop.f32.mrf.mxu0
    %v872 = vadd.f32 %v846, %v871
    %873 = vdwg.mxu0
    %v874 = vadd.f32 %v870, %v795
    %v875 = vadd.f32 %v872, %v796
    %v876 = vsel %vm90, %v874, 0.0
    %877 = vadd.xlane.f32.xlu0 %v876
    %v878 = vpop.xlane.xlu0 %877
    %v879 = vsel %vm90, %v875, 0.0
    %880 = vadd.xlane.f32.xlu0 %v879
    %v881 = vpop.xlane.xlu0 %880
    %v882 = vmul.f32 %v878, %v103
    %v883 = vmul.f32 %v881, %v103
    %v884 = vsub.f32 %v874, %v882
    %v885 = vsub.f32 %v875, %v883
    %v886 = vmul.f32 %v884, %v884
    %v887 = vmul.f32 %v885, %v885
    %v888 = vsel %vm90, %v886, 0.0
    %889 = vadd.xlane.f32.xlu0 %v888
    %v890 = vpop.xlane.xlu0 %889
    %v891 = vsel %vm90, %v887, 0.0
    %892 = vadd.xlane.f32.xlu0 %v891
    %v893 = vpop.xlane.xlu0 %892
    %v894 = vmul.f32 %v890, %v103
    %v895 = vmul.f32 %v893, %v103
    %v896 = vadd.f32 %v894, 1e-12
    %v897 = vadd.f32 %v895, 1e-12
    %v898 = vrsqrt.pop %v896
    %v899 = vmul.f32 %v898, %v896
    %v900 = vmul.f32 %v899, %v898
    %v901 = vmul.f32 0.5, %v900
    %v902 = vsub.f32 1.5, %v901
    %v903 = vmul.f32 %v898, %v902
    %vm904 = vweird.f32 %v896
    %vm905 = vweird.f32 %v898
    %vm906 = vmor %vm904, %vm905
    %v907 = vsel %vm906, %v898, %v903
    %v908 = vrsqrt.pop %v897
    %v909 = vmul.f32 %v908, %v897
    %v910 = vmul.f32 %v909, %v908
    %v911 = vmul.f32 0.5, %v910
    %v912 = vsub.f32 1.5, %v911
    %v913 = vmul.f32 %v908, %v912
    %vm914 = vweird.f32 %v897
    %vm915 = vweird.f32 %v908
    %vm916 = vmor %vm914, %vm915
    %v917 = vsel %vm916, %v908, %v913
    %v918 = vmul.f32 %v884, %v907
    %v919 = vmul.f32 %v885, %v917
    %v921 = vperm.slane %v174, 0
    %v923 = vmul.f32 %v918, %v921
    %v924 = vmul.f32 %v919, %v921
    %v926 = vperm.slane %v176, 0
    %v928 = vadd.f32 %v923, %v926
    %v929 = vadd.f32 %v924, %v926
    %s930 = scalar_lea.vmem %s3, 48
    %v931 = vld [vmem:[%s930] sm:$0xff]
    %v932 = vld [vmem:[%s930 + $0x8] sm:$0xf]
    %v933 = vld [vmem:[%s930 + $0xc] sm:$0xff]
    %v934 = vld [vmem:[%s930 + $0x14] sm:$0xf]
    %v935 = vld [vmem:[%s930 + $0x18] sm:$0xff]
    %v936 = vld [vmem:[%s930 + $0x20] sm:$0xf]
    %v937 = vld [vmem:[%s930 + $0x24] sm:$0xff]
    %v938 = vld [vmem:[%s930 + $0x2c] sm:$0xf]
    %s939 = scalar_lea.vmem %s4, 8
    %v940 = vld [vmem:[%s939] sm:$0x1]
    %s941 = scalar_lea.vmem %s4, 9
    %v942 = vld [vmem:[%s941] sm:$0x1]
    %s943 = scalar_lea.vmem %s4, 10
    %v944 = vld [vmem:[%s943] sm:$0x1]
    %s945 = scalar_lea.vmem %s4, 11
    %v946 = vld [vmem:[%s945] sm:$0x1]
    %s947 = scalar_lea.vmem %s4, 12
    %v948 = vld [vmem:[%s947] sm:$0x1]
    %s949 = scalar_lea.vmem %s4, 13
    %v950 = vld [vmem:[%s949] sm:$0x1]
    %s951 = scalar_lea.vmem %s4, 14
    %v952 = vld [vmem:[%s951] sm:$0x1]
    %s953 = scalar_lea.vmem %s4, 15
    %v954 = vld [vmem:[%s953] sm:$0x1]
    %v955 = vpack.c.bf16 %v929, %v928
    %v957 = vperm.slane %v940, 0
    %v963 = vunpack.c.l.b16 %v931
    %v964 = vunpack.c.l.b16 %v933
    %v965 = vunpack.c.l.b16 %v935
    %v966 = vunpack.c.l.b16 %v937
    %v967 = vpack.c.b16 %v964, %v963
    %v968 = vpack.c.b16 %v966, %v965
    %v972 = vsel %vm90, %v955, 0
    %974 = vmatpush.bf16.msra.mxu0 0
    %975 = vmatpush.bf16.msra.mxu0 0
    %976 = vmatpush.bf16.msra.mxu0 0
    %977 = vmatpush.bf16.msra.mxu0 0
    %978 = vmatpush.bf16.msra.mxu0 0
    %979 = vmatpush.bf16.msra.mxu0 0
    %980 = vmatpush.bf16.msra.mxu0 %v968
    %981 = vmatpush.bf16.msra.mxu0 %v967
    %982 = vmatmul.bf16.gmra.mxu0 %v972
    %v983 = vpop.f32.mrf.mxu0
    %v984 = vadd.f32 %v957, %v983
    %v985 = vpop.f32.mrf.mxu0
    %v986 = vadd.f32 %v957, %v985
    %987 = vdwg.mxu0
    %v988 = vpack.c.bf16 %v984, %v984
    %v989 = vpack.c.bf16 %v986, %v986
    %v991 = vunpack.c.l.b16 %v988
    %v992 = vpack.c.b16 %v991, %v991
    %993 = vrot.lane.b32.xlu0 %v992, 96
    %v994 = vpop.permute.xlu0 %993
    %v996 = vsel %vm217, %v988, 0
    %v999 = vsel %vm217, %v994, 0
    %1001 = vmatpush.bf16.xpose.msra.mxu0 0
    %1002 = vmatpush.bf16.xpose.msra.mxu0 0
    %1003 = vmatpush.bf16.xpose.msra.mxu0 0
    %1004 = vmatpush.bf16.xpose.msra.mxu0 0
    %1005 = vmatpush.bf16.xpose.msra.mxu0 0
    %1006 = vmatpush.bf16.xpose.msra.mxu0 0
    %1007 = vmatpush.bf16.xpose.msra.mxu0 0
    %1008 = vmatpush.bf16.xpose.msra.mxu0 %v999
    %1009 = vmatmul.bf16.gmra.mxu0 %v996
    %v1010 = vpop.f32.mrf.mxu0
    %v1011 = vadd.f32 0.0, %v1010
    %v1012 = vpop.f32.mrf.mxu0
    %1013 = vdwg.mxu0
    %v1014 = vmul.f32 %v1011, 0.35355338
    %v1015 = vadd.f32 %v1014, %v238
    %v1016 = vsel %vm217, %v1015, -inf
    %1017 = vmax.xlane.f32.xlu0 %v1016
    %v1018 = vpop.xlane.xlu0 %1017
    %v1019 = vsub.f32 %v1015, %v1018
    %v1020 = vmul.f32 %v1019, 1.442695
    %v1021 = vpow.pop %v1020
    %v1022 = vsel %vm217, %v1021, 0.0
    %1023 = vadd.xlane.f32.xlu0 %v1022
    %v1024 = vpop.xlane.xlu0 %1023
    %v1025 = vrcp.pop %v1024
    %v1026 = vmul.f32 %v1021, %v1025
    %v1027 = vpack.c.bf16 %v1026, %v1026
    %1028 = vrot.lane.b32.xlu0 %v992, 64
    %v1029 = vpop.permute.xlu0 %1028
    %v1031 = vsel %vm217, %v1027, 0
    %v1034 = vsel %vm257, %v1029, 0
    %1036 = vmatpush.bf16.msra.mxu0 0
    %1037 = vmatpush.bf16.msra.mxu0 0
    %1038 = vmatpush.bf16.msra.mxu0 0
    %1039 = vmatpush.bf16.msra.mxu0 0
    %1040 = vmatpush.bf16.msra.mxu0 0
    %1041 = vmatpush.bf16.msra.mxu0 0
    %1042 = vmatpush.bf16.msra.mxu0 0
    %1043 = vmatpush.bf16.msra.mxu0 %v1034
    %1044 = vmatmul.bf16.gmra.mxu0 %v1031
    %v1045 = vpop.f32.mrf.mxu0
    %v1046 = vadd.f32 0.0, %v1045
    %v1047 = vpop.f32.mrf.mxu0
    %1048 = vdwg.mxu0
    %1049 = vrot.lane.b32.xlu0 %v992, 120
    %v1050 = vpop.permute.xlu0 %1049
    %1051 = vrot.lane.b32.xlu0 %v992, 88
    %v1052 = vpop.permute.xlu0 %1051
    %v1054 = vsel %vm217, %v1050, 0
    %v1057 = vsel %vm217, %v1052, 0
    %1059 = vmatpush.bf16.xpose.msra.mxu0 0
    %1060 = vmatpush.bf16.xpose.msra.mxu0 0
    %1061 = vmatpush.bf16.xpose.msra.mxu0 0
    %1062 = vmatpush.bf16.xpose.msra.mxu0 0
    %1063 = vmatpush.bf16.xpose.msra.mxu0 0
    %1064 = vmatpush.bf16.xpose.msra.mxu0 0
    %1065 = vmatpush.bf16.xpose.msra.mxu0 0
    %1066 = vmatpush.bf16.xpose.msra.mxu0 %v1057
    %1067 = vmatmul.bf16.gmra.mxu0 %v1054
    %v1068 = vpop.f32.mrf.mxu0
    %v1069 = vadd.f32 0.0, %v1068
    %v1070 = vpop.f32.mrf.mxu0
    %1071 = vdwg.mxu0
    %v1072 = vmul.f32 %v1069, 0.35355338
    %v1073 = vadd.f32 %v1072, %v238
    %v1074 = vsel %vm217, %v1073, -inf
    %1075 = vmax.xlane.f32.xlu0 %v1074
    %v1076 = vpop.xlane.xlu0 %1075
    %v1077 = vsub.f32 %v1073, %v1076
    %v1078 = vmul.f32 %v1077, 1.442695
    %v1079 = vpow.pop %v1078
    %v1080 = vsel %vm217, %v1079, 0.0
    %1081 = vadd.xlane.f32.xlu0 %v1080
    %v1082 = vpop.xlane.xlu0 %1081
    %v1083 = vrcp.pop %v1082
    %v1084 = vmul.f32 %v1079, %v1083
    %v1085 = vpack.c.bf16 %v1084, %v1084
    %1086 = vrot.lane.b32.xlu0 %v992, 56
    %v1087 = vpop.permute.xlu0 %1086
    %v1089 = vsel %vm217, %v1085, 0
    %v1092 = vsel %vm257, %v1087, 0
    %1094 = vmatpush.bf16.msra.mxu0 0
    %1095 = vmatpush.bf16.msra.mxu0 0
    %1096 = vmatpush.bf16.msra.mxu0 0
    %1097 = vmatpush.bf16.msra.mxu0 0
    %1098 = vmatpush.bf16.msra.mxu0 0
    %1099 = vmatpush.bf16.msra.mxu0 0
    %1100 = vmatpush.bf16.msra.mxu0 0
    %1101 = vmatpush.bf16.msra.mxu0 %v1092
    %1102 = vmatmul.bf16.gmra.mxu0 %v1089
    %v1103 = vpop.f32.mrf.mxu0
    %v1104 = vadd.f32 0.0, %v1103
    %v1105 = vpop.f32.mrf.mxu0
    %1106 = vdwg.mxu0
    %1107 = vrot.lane.b32.xlu0 %v992, 112
    %v1108 = vpop.permute.xlu0 %1107
    %1109 = vrot.lane.b32.xlu0 %v992, 80
    %v1110 = vpop.permute.xlu0 %1109
    %v1112 = vsel %vm217, %v1108, 0
    %v1115 = vsel %vm217, %v1110, 0
    %1117 = vmatpush.bf16.xpose.msra.mxu0 0
    %1118 = vmatpush.bf16.xpose.msra.mxu0 0
    %1119 = vmatpush.bf16.xpose.msra.mxu0 0
    %1120 = vmatpush.bf16.xpose.msra.mxu0 0
    %1121 = vmatpush.bf16.xpose.msra.mxu0 0
    %1122 = vmatpush.bf16.xpose.msra.mxu0 0
    %1123 = vmatpush.bf16.xpose.msra.mxu0 0
    %1124 = vmatpush.bf16.xpose.msra.mxu0 %v1115
    %1125 = vmatmul.bf16.gmra.mxu0 %v1112
    %v1126 = vpop.f32.mrf.mxu0
    %v1127 = vadd.f32 0.0, %v1126
    %v1128 = vpop.f32.mrf.mxu0
    %1129 = vdwg.mxu0
    %v1130 = vmul.f32 %v1127, 0.35355338
    %v1131 = vadd.f32 %v1130, %v238
    %v1132 = vsel %vm217, %v1131, -inf
    %1133 = vmax.xlane.f32.xlu0 %v1132
    %v1134 = vpop.xlane.xlu0 %1133
    %v1135 = vsub.f32 %v1131, %v1134
    %v1136 = vmul.f32 %v1135, 1.442695
    %v1137 = vpow.pop %v1136
    %v1138 = vsel %vm217, %v1137, 0.0
    %1139 = vadd.xlane.f32.xlu0 %v1138
    %v1140 = vpop.xlane.xlu0 %1139
    %v1141 = vrcp.pop %v1140
    %v1142 = vmul.f32 %v1137, %v1141
    %v1143 = vpack.c.bf16 %v1142, %v1142
    %1144 = vrot.lane.b32.xlu0 %v992, 48
    %v1145 = vpop.permute.xlu0 %1144
    %v1147 = vsel %vm217, %v1143, 0
    %v1150 = vsel %vm257, %v1145, 0
    %1152 = vmatpush.bf16.msra.mxu0 0
    %1153 = vmatpush.bf16.msra.mxu0 0
    %1154 = vmatpush.bf16.msra.mxu0 0
    %1155 = vmatpush.bf16.msra.mxu0 0
    %1156 = vmatpush.bf16.msra.mxu0 0
    %1157 = vmatpush.bf16.msra.mxu0 0
    %1158 = vmatpush.bf16.msra.mxu0 0
    %1159 = vmatpush.bf16.msra.mxu0 %v1150
    %1160 = vmatmul.bf16.gmra.mxu0 %v1147
    %v1161 = vpop.f32.mrf.mxu0
    %v1162 = vadd.f32 0.0, %v1161
    %v1163 = vpop.f32.mrf.mxu0
    %1164 = vdwg.mxu0
    %1165 = vrot.lane.b32.xlu0 %v992, 104
    %v1166 = vpop.permute.xlu0 %1165
    %1167 = vrot.lane.b32.xlu0 %v992, 72
    %v1168 = vpop.permute.xlu0 %1167
    %v1170 = vsel %vm217, %v1166, 0
    %v1173 = vsel %vm217, %v1168, 0
    %1175 = vmatpush.bf16.xpose.msra.mxu0 0
    %1176 = vmatpush.bf16.xpose.msra.mxu0 0
    %1177 = vmatpush.bf16.xpose.msra.mxu0 0
    %1178 = vmatpush.bf16.xpose.msra.mxu0 0
    %1179 = vmatpush.bf16.xpose.msra.mxu0 0
    %1180 = vmatpush.bf16.xpose.msra.mxu0 0
    %1181 = vmatpush.bf16.xpose.msra.mxu0 0
    %1182 = vmatpush.bf16.xpose.msra.mxu0 %v1173
    %1183 = vmatmul.bf16.gmra.mxu0 %v1170
    %v1184 = vpop.f32.mrf.mxu0
    %v1185 = vadd.f32 0.0, %v1184
    %v1186 = vpop.f32.mrf.mxu0
    %1187 = vdwg.mxu0
    %v1188 = vmul.f32 %v1185, 0.35355338
    %v1189 = vadd.f32 %v1188, %v238
    %v1190 = vsel %vm217, %v1189, -inf
    %1191 = vmax.xlane.f32.xlu0 %v1190
    %v1192 = vpop.xlane.xlu0 %1191
    %v1193 = vsub.f32 %v1189, %v1192
    %v1194 = vmul.f32 %v1193, 1.442695
    %v1195 = vpow.pop %v1194
    %v1196 = vsel %vm217, %v1195, 0.0
    %1197 = vadd.xlane.f32.xlu0 %v1196
    %v1198 = vpop.xlane.xlu0 %1197
    %v1199 = vrcp.pop %v1198
    %v1200 = vmul.f32 %v1195, %v1199
    %v1201 = vpack.c.bf16 %v1200, %v1200
    %1202 = vrot.lane.b32.xlu0 %v992, 40
    %v1203 = vpop.permute.xlu0 %1202
    %v1205 = vsel %vm217, %v1201, 0
    %v1208 = vsel %vm257, %v1203, 0
    %1210 = vmatpush.bf16.msra.mxu0 0
    %1211 = vmatpush.bf16.msra.mxu0 0
    %1212 = vmatpush.bf16.msra.mxu0 0
    %1213 = vmatpush.bf16.msra.mxu0 0
    %1214 = vmatpush.bf16.msra.mxu0 0
    %1215 = vmatpush.bf16.msra.mxu0 0
    %1216 = vmatpush.bf16.msra.mxu0 0
    %1217 = vmatpush.bf16.msra.mxu0 %v1208
    %1218 = vmatmul.bf16.gmra.mxu0 %v1205
    %v1219 = vpop.f32.mrf.mxu0
    %v1220 = vadd.f32 0.0, %v1219
    %v1221 = vpop.f32.mrf.mxu0
    %1222 = vdwg.mxu0
    %1224 = vrot.lane.b32.xlu0 %v1104, 8
    %v1225 = vpop.permute.xlu0 %1224
    %1228 = vrot.lane.b32.xlu0 %v1162, 16
    %v1229 = vpop.permute.xlu0 %1228
    %1232 = vrot.lane.b32.xlu0 %v1220, 24
    %v1233 = vpop.permute.xlu0 %1232
    %v1235 = vsel %vm217, %v1046, %v1225
    %v1236 = vsel %vm461, %v1235, %v1229
    %v1237 = vsel %vm463, %v1236, %v1233
    %v1239 = vunpack.c.l.b16 %v989
    %v1240 = vpack.c.b16 %v1239, %v1239
    %1241 = vrot.lane.b32.xlu0 %v1240, 96
    %v1242 = vpop.permute.xlu0 %1241
    %v1244 = vsel %vm217, %v989, 0
    %v1247 = vsel %vm217, %v1242, 0
    %1249 = vmatpush.bf16.xpose.msra.mxu0 0
    %1250 = vmatpush.bf16.xpose.msra.mxu0 0
    %1251 = vmatpush.bf16.xpose.msra.mxu0 0
    %1252 = vmatpush.bf16.xpose.msra.mxu0 0
    %1253 = vmatpush.bf16.xpose.msra.mxu0 0
    %1254 = vmatpush.bf16.xpose.msra.mxu0 0
    %1255 = vmatpush.bf16.xpose.msra.mxu0 0
    %1256 = vmatpush.bf16.xpose.msra.mxu0 %v1247
    %1257 = vmatmul.bf16.gmra.mxu0 %v1244
    %v1258 = vpop.f32.mrf.mxu0
    %v1259 = vadd.f32 0.0, %v1258
    %v1260 = vpop.f32.mrf.mxu0
    %1261 = vdwg.mxu0
    %v1262 = vmul.f32 %v1259, 0.35355338
    %v1263 = vadd.f32 %v1262, %v490
    %v1264 = vsel %vm217, %v1263, -inf
    %1265 = vmax.xlane.f32.xlu0 %v1264
    %v1266 = vpop.xlane.xlu0 %1265
    %v1267 = vsub.f32 %v1263, %v1266
    %v1268 = vmul.f32 %v1267, 1.442695
    %v1269 = vpow.pop %v1268
    %v1270 = vsel %vm217, %v1269, 0.0
    %1271 = vadd.xlane.f32.xlu0 %v1270
    %v1272 = vpop.xlane.xlu0 %1271
    %v1273 = vrcp.pop %v1272
    %v1274 = vmul.f32 %v1269, %v1273
    %v1275 = vpack.c.bf16 %v1274, %v1274
    %1276 = vrot.lane.b32.xlu0 %v1240, 64
    %v1277 = vpop.permute.xlu0 %1276
    %v1279 = vsel %vm217, %v1275, 0
    %v1282 = vsel %vm257, %v1277, 0
    %1284 = vmatpush.bf16.msra.mxu0 0
    %1285 = vmatpush.bf16.msra.mxu0 0
    %1286 = vmatpush.bf16.msra.mxu0 0
    %1287 = vmatpush.bf16.msra.mxu0 0
    %1288 = vmatpush.bf16.msra.mxu0 0
    %1289 = vmatpush.bf16.msra.mxu0 0
    %1290 = vmatpush.bf16.msra.mxu0 0
    %1291 = vmatpush.bf16.msra.mxu0 %v1282
    %1292 = vmatmul.bf16.gmra.mxu0 %v1279
    %v1293 = vpop.f32.mrf.mxu0
    %v1294 = vadd.f32 0.0, %v1293
    %v1295 = vpop.f32.mrf.mxu0
    %1296 = vdwg.mxu0
    %1297 = vrot.lane.b32.xlu0 %v1240, 120
    %v1298 = vpop.permute.xlu0 %1297
    %1299 = vrot.lane.b32.xlu0 %v1240, 88
    %v1300 = vpop.permute.xlu0 %1299
    %v1302 = vsel %vm217, %v1298, 0
    %v1305 = vsel %vm217, %v1300, 0
    %1307 = vmatpush.bf16.xpose.msra.mxu0 0
    %1308 = vmatpush.bf16.xpose.msra.mxu0 0
    %1309 = vmatpush.bf16.xpose.msra.mxu0 0
    %1310 = vmatpush.bf16.xpose.msra.mxu0 0
    %1311 = vmatpush.bf16.xpose.msra.mxu0 0
    %1312 = vmatpush.bf16.xpose.msra.mxu0 0
    %1313 = vmatpush.bf16.xpose.msra.mxu0 0
    %1314 = vmatpush.bf16.xpose.msra.mxu0 %v1305
    %1315 = vmatmul.bf16.gmra.mxu0 %v1302
    %v1316 = vpop.f32.mrf.mxu0
    %v1317 = vadd.f32 0.0, %v1316
    %v1318 = vpop.f32.mrf.mxu0
    %1319 = vdwg.mxu0
    %v1320 = vmul.f32 %v1317, 0.35355338
    %v1321 = vadd.f32 %v1320, %v490
    %v1322 = vsel %vm217, %v1321, -inf
    %1323 = vmax.xlane.f32.xlu0 %v1322
    %v1324 = vpop.xlane.xlu0 %1323
    %v1325 = vsub.f32 %v1321, %v1324
    %v1326 = vmul.f32 %v1325, 1.442695
    %v1327 = vpow.pop %v1326
    %v1328 = vsel %vm217, %v1327, 0.0
    %1329 = vadd.xlane.f32.xlu0 %v1328
    %v1330 = vpop.xlane.xlu0 %1329
    %v1331 = vrcp.pop %v1330
    %v1332 = vmul.f32 %v1327, %v1331
    %v1333 = vpack.c.bf16 %v1332, %v1332
    %1334 = vrot.lane.b32.xlu0 %v1240, 56
    %v1335 = vpop.permute.xlu0 %1334
    %v1337 = vsel %vm217, %v1333, 0
    %v1340 = vsel %vm257, %v1335, 0
    %1342 = vmatpush.bf16.msra.mxu0 0
    %1343 = vmatpush.bf16.msra.mxu0 0
    %1344 = vmatpush.bf16.msra.mxu0 0
    %1345 = vmatpush.bf16.msra.mxu0 0
    %1346 = vmatpush.bf16.msra.mxu0 0
    %1347 = vmatpush.bf16.msra.mxu0 0
    %1348 = vmatpush.bf16.msra.mxu0 0
    %1349 = vmatpush.bf16.msra.mxu0 %v1340
    %1350 = vmatmul.bf16.gmra.mxu0 %v1337
    %v1351 = vpop.f32.mrf.mxu0
    %v1352 = vadd.f32 0.0, %v1351
    %v1353 = vpop.f32.mrf.mxu0
    %1354 = vdwg.mxu0
    %1355 = vrot.lane.b32.xlu0 %v1240, 112
    %v1356 = vpop.permute.xlu0 %1355
    %1357 = vrot.lane.b32.xlu0 %v1240, 80
    %v1358 = vpop.permute.xlu0 %1357
    %v1360 = vsel %vm217, %v1356, 0
    %v1363 = vsel %vm217, %v1358, 0
    %1365 = vmatpush.bf16.xpose.msra.mxu0 0
    %1366 = vmatpush.bf16.xpose.msra.mxu0 0
    %1367 = vmatpush.bf16.xpose.msra.mxu0 0
    %1368 = vmatpush.bf16.xpose.msra.mxu0 0
    %1369 = vmatpush.bf16.xpose.msra.mxu0 0
    %1370 = vmatpush.bf16.xpose.msra.mxu0 0
    %1371 = vmatpush.bf16.xpose.msra.mxu0 0
    %1372 = vmatpush.bf16.xpose.msra.mxu0 %v1363
    %1373 = vmatmul.bf16.gmra.mxu0 %v1360
    %v1374 = vpop.f32.mrf.mxu0
    %v1375 = vadd.f32 0.0, %v1374
    %v1376 = vpop.f32.mrf.mxu0
    %1377 = vdwg.mxu0
    %v1378 = vmul.f32 %v1375, 0.35355338
    %v1379 = vadd.f32 %v1378, %v490
    %v1380 = vsel %vm217, %v1379, -inf
    %1381 = vmax.xlane.f32.xlu0 %v1380
    %v1382 = vpop.xlane.xlu0 %1381
    %v1383 = vsub.f32 %v1379, %v1382
    %v1384 = vmul.f32 %v1383, 1.442695
    %v1385 = vpow.pop %v1384
    %v1386 = vsel %vm217, %v1385, 0.0
    %1387 = vadd.xlane.f32.xlu0 %v1386
    %v1388 = vpop.xlane.xlu0 %1387
    %v1389 = vrcp.pop %v1388
    %v1390 = vmul.f32 %v1385, %v1389
    %v1391 = vpack.c.bf16 %v1390, %v1390
    %1392 = vrot.lane.b32.xlu0 %v1240, 48
    %v1393 = vpop.permute.xlu0 %1392
    %v1395 = vsel %vm217, %v1391, 0
    %v1398 = vsel %vm257, %v1393, 0
    %1400 = vmatpush.bf16.msra.mxu0 0
    %1401 = vmatpush.bf16.msra.mxu0 0
    %1402 = vmatpush.bf16.msra.mxu0 0
    %1403 = vmatpush.bf16.msra.mxu0 0
    %1404 = vmatpush.bf16.msra.mxu0 0
    %1405 = vmatpush.bf16.msra.mxu0 0
    %1406 = vmatpush.bf16.msra.mxu0 0
    %1407 = vmatpush.bf16.msra.mxu0 %v1398
    %1408 = vmatmul.bf16.gmra.mxu0 %v1395
    %v1409 = vpop.f32.mrf.mxu0
    %v1410 = vadd.f32 0.0, %v1409
    %v1411 = vpop.f32.mrf.mxu0
    %1412 = vdwg.mxu0
    %1413 = vrot.lane.b32.xlu0 %v1240, 104
    %v1414 = vpop.permute.xlu0 %1413
    %1415 = vrot.lane.b32.xlu0 %v1240, 72
    %v1416 = vpop.permute.xlu0 %1415
    %v1418 = vsel %vm217, %v1414, 0
    %v1421 = vsel %vm217, %v1416, 0
    %1423 = vmatpush.bf16.xpose.msra.mxu0 0
    %1424 = vmatpush.bf16.xpose.msra.mxu0 0
    %1425 = vmatpush.bf16.xpose.msra.mxu0 0
    %1426 = vmatpush.bf16.xpose.msra.mxu0 0
    %1427 = vmatpush.bf16.xpose.msra.mxu0 0
    %1428 = vmatpush.bf16.xpose.msra.mxu0 0
    %1429 = vmatpush.bf16.xpose.msra.mxu0 0
    %1430 = vmatpush.bf16.xpose.msra.mxu0 %v1421
    %1431 = vmatmul.bf16.gmra.mxu0 %v1418
    %v1432 = vpop.f32.mrf.mxu0
    %v1433 = vadd.f32 0.0, %v1432
    %v1434 = vpop.f32.mrf.mxu0
    %1435 = vdwg.mxu0
    %v1436 = vmul.f32 %v1433, 0.35355338
    %v1437 = vadd.f32 %v1436, %v490
    %v1438 = vsel %vm217, %v1437, -inf
    %1439 = vmax.xlane.f32.xlu0 %v1438
    %v1440 = vpop.xlane.xlu0 %1439
    %v1441 = vsub.f32 %v1437, %v1440
    %v1442 = vmul.f32 %v1441, 1.442695
    %v1443 = vpow.pop %v1442
    %v1444 = vsel %vm217, %v1443, 0.0
    %1445 = vadd.xlane.f32.xlu0 %v1444
    %v1446 = vpop.xlane.xlu0 %1445
    %v1447 = vrcp.pop %v1446
    %v1448 = vmul.f32 %v1443, %v1447
    %v1449 = vpack.c.bf16 %v1448, %v1448
    %1450 = vrot.lane.b32.xlu0 %v1240, 40
    %v1451 = vpop.permute.xlu0 %1450
    %v1453 = vsel %vm217, %v1449, 0
    %v1456 = vsel %vm257, %v1451, 0
    %1458 = vmatpush.bf16.msra.mxu0 0
    %1459 = vmatpush.bf16.msra.mxu0 0
    %1460 = vmatpush.bf16.msra.mxu0 0
    %1461 = vmatpush.bf16.msra.mxu0 0
    %1462 = vmatpush.bf16.msra.mxu0 0
    %1463 = vmatpush.bf16.msra.mxu0 0
    %1464 = vmatpush.bf16.msra.mxu0 0
    %1465 = vmatpush.bf16.msra.mxu0 %v1456
    %1466 = vmatmul.bf16.gmra.mxu0 %v1453
    %v1467 = vpop.f32.mrf.mxu0
    %v1468 = vadd.f32 0.0, %v1467
    %v1469 = vpop.f32.mrf.mxu0
    %1470 = vdwg.mxu0
    %1472 = vrot.lane.b32.xlu0 %v1352, 8
    %v1473 = vpop.permute.xlu0 %1472
    %1476 = vrot.lane.b32.xlu0 %v1410, 16
    %v1477 = vpop.permute.xlu0 %1476
    %1480 = vrot.lane.b32.xlu0 %v1468, 24
    %v1481 = vpop.permute.xlu0 %1480
    %v1483 = vsel %vm217, %v1294, %v1473
    %v1484 = vsel %vm461, %v1483, %v1477
    %v1485 = vsel %vm463, %v1484, %v1481
    %v1486 = vpack.c.bf16 %v1485, %v1237
    %v1488 = vperm.slane %v942, 0
    %1490 = vrot.lane.b32.xlu0 %v967, 32
    %v1491 = vpop.permute.xlu0 %1490
    %1492 = vrot.lane.b32.xlu0 %v968, 32
    %v1493 = vpop.permute.xlu0 %1492
    %v1497 = vsel %vm90, %v1486, 0
    %1499 = vmatpush.bf16.msra.mxu0 0
    %1500 = vmatpush.bf16.msra.mxu0 0
    %1501 = vmatpush.bf16.msra.mxu0 0
    %1502 = vmatpush.bf16.msra.mxu0 0
    %1503 = vmatpush.bf16.msra.mxu0 0
    %1504 = vmatpush.bf16.msra.mxu0 0
    %1505 = vmatpush.bf16.msra.mxu0 %v1493
    %1506 = vmatpush.bf16.msra.mxu0 %v1491
    %1507 = vmatmul.bf16.gmra.mxu0 %v1497
    %v1508 = vpop.f32.mrf.mxu0
    %v1509 = vadd.f32 %v1488, %v1508
    %v1510 = vpop.f32.mrf.mxu0
    %v1511 = vadd.f32 %v1488, %v1510
    %1512 = vdwg.mxu0
    %v1513 = vadd.f32 %v1509, %v928
    %v1514 = vadd.f32 %v1511, %v929
    %v1515 = vsel %vm90, %v1513, 0.0
    %1516 = vadd.xlane.f32.xlu0 %v1515
    %v1517 = vpop.xlane.xlu0 %1516
    %v1518 = vsel %vm90, %v1514, 0.0
    %1519 = vadd.xlane.f32.xlu0 %v1518
    %v1520 = vpop.xlane.xlu0 %1519
    %v1521 = vmul.f32 %v1517, %v103
    %v1522 = vmul.f32 %v1520, %v103
    %v1523 = vsub.f32 %v1513, %v1521
    %v1524 = vsub.f32 %v1514, %v1522
    %v1525 = vmul.f32 %v1523, %v1523
    %v1526 = vmul.f32 %v1524, %v1524
    %v1527 = vsel %vm90, %v1525, 0.0
    %1528 = vadd.xlane.f32.xlu0 %v1527
    %v1529 = vpop.xlane.xlu0 %1528
    %v1530 = vsel %vm90, %v1526, 0.0
    %1531 = vadd.xlane.f32.xlu0 %v1530
    %v1532 = vpop.xlane.xlu0 %1531
    %v1533 = vmul.f32 %v1529, %v103
    %v1534 = vmul.f32 %v1532, %v103
    %v1535 = vadd.f32 %v1533, 1e-12
    %v1536 = vadd.f32 %v1534, 1e-12
    %v1537 = vrsqrt.pop %v1535
    %v1538 = vmul.f32 %v1537, %v1535
    %v1539 = vmul.f32 %v1538, %v1537
    %v1540 = vmul.f32 0.5, %v1539
    %v1541 = vsub.f32 1.5, %v1540
    %v1542 = vmul.f32 %v1537, %v1541
    %vm1543 = vweird.f32 %v1535
    %vm1544 = vweird.f32 %v1537
    %vm1545 = vmor %vm1543, %vm1544
    %v1546 = vsel %vm1545, %v1537, %v1542
    %v1547 = vrsqrt.pop %v1536
    %v1548 = vmul.f32 %v1547, %v1536
    %v1549 = vmul.f32 %v1548, %v1547
    %v1550 = vmul.f32 0.5, %v1549
    %v1551 = vsub.f32 1.5, %v1550
    %v1552 = vmul.f32 %v1547, %v1551
    %vm1553 = vweird.f32 %v1536
    %vm1554 = vweird.f32 %v1547
    %vm1555 = vmor %vm1553, %vm1554
    %v1556 = vsel %vm1555, %v1547, %v1552
    %v1557 = vmul.f32 %v1523, %v1546
    %v1558 = vmul.f32 %v1524, %v1556
    %v1560 = vperm.slane %v944, 0
    %v1562 = vmul.f32 %v1557, %v1560
    %v1563 = vmul.f32 %v1558, %v1560
    %v1565 = vperm.slane %v946, 0
    %v1567 = vadd.f32 %v1562, %v1565
    %v1568 = vadd.f32 %v1563, %v1565
    %v1569 = vpack.c.bf16 %v1568, %v1567
    %v1571 = vperm.slane %v948, 0
    %v1573 = vunpack.c.h.b16 %v931
    %v1574 = vunpack.c.h.b16 %v933
    %v1575 = vunpack.c.h.b16 %v935
    %v1576 = vunpack.c.h.b16 %v937
    %v1577 = vpack.c.b16 %v1574, %v1573
    %v1578 = vpack.c.b16 %v1576, %v1575
    %v1582 = vsel %vm90, %v1569, 0
    %1584 = vmatpush.bf16.msra.mxu0 0
    %1585 = vmatpush.bf16.msra.mxu0 0
    %1586 = vmatpush.bf16.msra.mxu0 0
    %1587 = vmatpush.bf16.msra.mxu0 0
    %1588 = vmatpush.bf16.msra.mxu0 0
    %1589 = vmatpush.bf16.msra.mxu0 0
    %1590 = vmatpush.bf16.msra.mxu0 %v1578
    %1591 = vmatpush.bf16.msra.mxu0 %v1577
    %1592 = vmatmul.bf16.gmra.mxu0 %v1582
    %v1593 = vpop.f32.mrf.mxu0
    %v1594 = vadd.f32 %v1571, %v1593
    %v1595 = vpop.f32.mrf.mxu0
    %v1596 = vadd.f32 %v1571, %v1595
    %1597 = vdwg.mxu0
    %v1598 = vmul.f32 %v1594, %v1594
    %v1599 = vmul.f32 %v1596, %v1596
    %v1600 = vmul.f32 %v1594, %v1598
    %v1601 = vmul.f32 %v1596, %v1599
    %v1602 = vmul.f32 %v1600, 0.044715
    %v1603 = vmul.f32 %v1601, 0.044715
    %v1604 = vadd.f32 %v1594, %v1602
    %v1605 = vadd.f32 %v1596, %v1603
    %v1606 = vmul.f32 %v1604, 0.7978846
    %v1607 = vmul.f32 %v1605, 0.7978846
    %v1608 = vtanh.pop %v1606
    %v1609 = vtanh.pop %v1607
    %v1610 = vadd.f32 %v1608, 1.0
    %v1611 = vadd.f32 %v1609, 1.0
    %v1612 = vmul.f32 %v1610, 0.5
    %v1613 = vmul.f32 %v1611, 0.5
    %v1614 = vmul.f32 %v1594, %v1612
    %v1615 = vmul.f32 %v1596, %v1613
    %v1616 = vpack.c.bf16 %v1615, %v1614
    %v1618 = vperm.slane %v950, 0
    %v1624 = vunpack.c.l.b16 %v932
    %v1625 = vunpack.c.l.b16 %v934
    %v1626 = vunpack.c.l.b16 %v936
    %v1627 = vunpack.c.l.b16 %v938
    %v1628 = vpack.c.b16 %v1625, %v1624
    %v1629 = vpack.c.b16 %v1627, %v1626
    %1632 = vmatpush.bf16.xpose.msra.mxu0 0
    %1633 = vmatpush.bf16.xpose.msra.mxu0 0
    %1634 = vmatpush.bf16.xpose.msra.mxu0 0
    %1635 = vmatpush.bf16.xpose.msra.mxu0 0
    %1636 = vmatpush.bf16.xpose.msra.mxu0 0
    %1637 = vmatpush.bf16.xpose.msra.mxu0 0
    %1638 = vmatpush.bf16.xpose.msra.mxu0 %v1629
    %1639 = vmatpush.bf16.xpose.msra.mxu0 %v1628
    %1640 = vmatmul.bf16.gmra.mxu0 %v1616
    %v1641 = vpop.f32.mrf.mxu0
    %v1642 = vadd.f32 %v1618, %v1641
    %v1643 = vpop.f32.mrf.mxu0
    %v1644 = vadd.f32 %v1618, %v1643
    %1645 = vdwg.mxu0
    %v1646 = vadd.f32 %v1642, %v1567
    %v1647 = vadd.f32 %v1644, %v1568
    %v1648 = vsel %vm90, %v1646, 0.0
    %1649 = vadd.xlane.f32.xlu0 %v1648
    %v1650 = vpop.xlane.xlu0 %1649
    %v1651 = vsel %vm90, %v1647, 0.0
    %1652 = vadd.xlane.f32.xlu0 %v1651
    %v1653 = vpop.xlane.xlu0 %1652
    %v1654 = vmul.f32 %v1650, %v103
    %v1655 = vmul.f32 %v1653, %v103
    %v1656 = vsub.f32 %v1646, %v1654
    %v1657 = vsub.f32 %v1647, %v1655
    %v1658 = vmul.f32 %v1656, %v1656
    %v1659 = vmul.f32 %v1657, %v1657
    %v1660 = vsel %vm90, %v1658, 0.0
    %1661 = vadd.xlane.f32.xlu0 %v1660
    %v1662 = vpop.xlane.xlu0 %1661
    %v1663 = vsel %vm90, %v1659, 0.0
    %1664 = vadd.xlane.f32.xlu0 %v1663
    %v1665 = vpop.xlane.xlu0 %1664
    %v1666 = vmul.f32 %v1662, %v103
    %v1667 = vmul.f32 %v1665, %v103
    %v1668 = vadd.f32 %v1666, 1e-12
    %v1669 = vadd.f32 %v1667, 1e-12
    %v1670 = vrsqrt.pop %v1668
    %v1671 = vmul.f32 %v1670, %v1668
    %v1672 = vmul.f32 %v1671, %v1670
    %v1673 = vmul.f32 0.5, %v1672
    %v1674 = vsub.f32 1.5, %v1673
    %v1675 = vmul.f32 %v1670, %v1674
    %vm1676 = vweird.f32 %v1668
    %vm1677 = vweird.f32 %v1670
    %vm1678 = vmor %vm1676, %vm1677
    %v1679 = vsel %vm1678, %v1670, %v1675
    %v1680 = vrsqrt.pop %v1669
    %v1681 = vmul.f32 %v1680, %v1669
    %v1682 = vmul.f32 %v1681, %v1680
    %v1683 = vmul.f32 0.5, %v1682
    %v1684 = vsub.f32 1.5, %v1683
    %v1685 = vmul.f32 %v1680, %v1684
    %vm1686 = vweird.f32 %v1669
    %vm1687 = vweird.f32 %v1680
    %vm1688 = vmor %vm1686, %vm1687
    %v1689 = vsel %vm1688, %v1680, %v1685
    %v1690 = vmul.f32 %v1656, %v1679
    %v1691 = vmul.f32 %v1657, %v1689
    %v1693 = vperm.slane %v952, 0
    %v1695 = vmul.f32 %v1690, %v1693
    %v1696 = vmul.f32 %v1691, %v1693
    %v1698 = vperm.slane %v954, 0
    %v1700 = vadd.f32 %v1695, %v1698
    %v1701 = vadd.f32 %v1696, %v1698
    %v1703 = vrot.slane %v1701, 7
    %vm1705 = vcmask 1040384
    %v1706 = vsel %vm1705, %v1700, %v1703
    %v1707 = vpack.c.bf16 %v86, %v85
    %v1708 = vpack.c.bf16 %v88, %v87
    %v1709 = vpack.c.bf16 %v1706, %v1706
    %1710 = vrot.lane.b32.xlu0 %v142, 64
    %v1711 = vpop.permute.xlu0 %1710
    %v1714 = vsel %vm90, %v1709, 0
    %1716 = vmatpush.bf16.msra.mxu0 0
    %1717 = vmatpush.bf16.msra.mxu0 0
    %1718 = vmatpush.bf16.msra.mxu0 0
    %1719 = vmatpush.bf16.msra.mxu0 0
    %1720 = vmatpush.bf16.msra.mxu0 0
    %1721 = vmatpush.bf16.msra.mxu0 0
    %1722 = vmatpush.bf16.msra.mxu0 %v1708
    %1723 = vmatpush.bf16.msra.mxu0 %v1707
    %1724 = vmatmul.bf16.gmra.mxu0 %v1714
    %v1725 = vpop.f32.mrf.mxu0
    %v1726 = vadd.f32 %v1711, %v1725
    %v1727 = vpop.f32.mrf.mxu0
    %1728 = vdwg.mxu0
    %v1729 = vtanh.pop %v1726
    %v1730 = vpack.c.bf16 %v1729, %v1729
    %1733 = vrot.lane.b32.xlu0 %v1707, 96
    %v1734 = vpop.permute.xlu0 %1733
    %1735 = vrot.lane.b32.xlu0 %v1708, 96
    %v1736 = vpop.permute.xlu0 %1735
    %1739 = vrot.lane.b32.xlu0 %v142, 32
    %v1740 = vpop.permute.xlu0 %1739
    %v1743 = vsel %vm90, %v1730, 0
    %1745 = vmatpush.bf16.msra.mxu0 0
    %1746 = vmatpush.bf16.msra.mxu0 0
    %1747 = vmatpush.bf16.msra.mxu0 0
    %1748 = vmatpush.bf16.msra.mxu0 0
    %1749 = vmatpush.bf16.msra.mxu0 0
    %1750 = vmatpush.bf16.msra.mxu0 0
    %1751 = vmatpush.bf16.msra.mxu0 %v1736
    %1752 = vmatpush.bf16.msra.mxu0 %v1734
    %1753 = vmatmul.bf16.gmra.mxu0 %v1743
    %v1754 = vpop.f32.mrf.mxu0
    %v1755 = vadd.f32 %v1740, %v1754
    %v1756 = vpop.f32.mrf.mxu0
    %1757 = vdwg.mxu0
    %vm1758 = vcmask 9216
    %v1759 = vsel %vm1758, %v1755, -inf
    %1760 = vmax.xlane.f32.xlu0 %v1759
    %v1761 = vpop.xlane.xlu0 %1760
    %v1762 = vsub.f32 %v1755, %v1761
    %v1763 = vmul.f32 %v1762, 1.442695
    %v1764 = vpow.pop %v1763
    %v1765 = vsel %vm1758, %v1764, 0.0
    %1766 = vadd.xlane.f32.xlu0 %v1765
    %v1767 = vpop.xlane.xlu0 %1766
    %v1768 = vrcp.pop %v1767
    %v1769 = vmul.f32 %v1764, %v1768
    %1770 = vst.msk [vmem:[#allocation2] sm:$0x3] %vm1758, %v1769
    // Predicated region
    $region26: #{forward.1} parent=1 // pred_check
      _
    $region27: #{forward.1} parent=1 // pred_check_branch
      %1772 = sbr.rel (0) target = $region29
    $region28: #{forward.1} parent=1 // pred_region
      %1774 = vsyncadd [#allocation3], 0
      %s1776 = sshll.u32 [#allocation2], 4
      %s1777 = int_to_ptr.vmem [resolvable:$true] %s1776
      %s1778 = sshll.u32 %s6, 4
      %s1779 = int_to_ptr.hbm [resolvable:$true] %s1778
      %1781 = dma.vmem_to_hbm [thread:$0]  %s1777, 32, %s1779, [#allocation3]
    $region29: #{forward.1} parent=1 // pred_fallthru
      _
    // Predicated region
    $region30: #{forward.1} parent=1 // pred_check
      _
    $region31: #{forward.1} parent=1 // pred_check_branch
      %1783 = sbr.rel (0) target = $region33
    $region32: #{forward.1} parent=1 // pred_region
      %1785 = dma.done [#allocation3], 32
    $region33: #{forward.1} parent=1 // pred_fallthru
      _
    %1786 = vsyncpa [#allocation3], 1

</llo_original>
